<compile_context>
chip_gen: v7x
topology: tpu7x:2x2x1
jax: 0.10.0
libtpu: 0.0.40
codegen_flags: <defaults>
</compile_context>

<pallas_src>
import functools
import math

import jax
import jax.numpy as jnp
from jax.experimental import pallas as pl
from jax.experimental.pallas import tpu as pltpu


# ---------------------------------------------------------------------------
# Kernel 1: patch embedding (conv with kernel=stride=P  ==  matmul) + bias
# ---------------------------------------------------------------------------

def _patch_embed_kernel(x_ref, w_ref, b_ref, o_ref):
    y = jnp.dot(x_ref[...], w_ref[...], preferred_element_type=jnp.float32)
    o_ref[...] = (y + b_ref[...]).astype(o_ref.dtype)


def patch_embed(patches, w, b):
    m = patches.shape[0]
    n = w.shape[1]
    vmem = pl.BlockSpec(memory_space=pltpu.MemorySpace.VMEM)
    return pl.pallas_call(
        _patch_embed_kernel,
        out_shape=jax.ShapeDtypeStruct((m, n), jnp.float32),
        in_specs=[vmem, vmem, vmem],
        out_specs=vmem,
    )(patches, w, b.reshape(1, n))


# ---------------------------------------------------------------------------
# Kernel 2: whole encoder stack, grid over layers, residual in VMEM scratch
# ---------------------------------------------------------------------------

def _encoder_stack_kernel(h0_ref, ln1g_ref, ln1b_ref, qkvw_ref, qkvb_ref,
                          ow_ref, ob_ref, ln2g_ref, ln2b_ref,
                          fc1w_ref, fc1b_ref, fc2w_ref, fc2b_ref,
                          flng_ref, flnb_ref,
                          layer_out_ref, last_ref,
                          h_scr, ctx_scr,
                          *, batch, seq_pad, seq_valid, heads, eps):
    T, hidden = h_scr.shape
    hd = hidden // heads

    # Initialize residual stream from the embeddings at layer 0 only.
    @pl.when(pl.program_id(0) == 0)
    def _():
        h_scr[...] = h0_ref[...].astype(jnp.float32)

    h = h_scr[...]  # (T, hidden) f32, T = batch * seq_pad

    def _ln(x, g, b):
        mu = jnp.mean(x, axis=-1, keepdims=True)
        var = jnp.mean((x - mu) ** 2, axis=-1, keepdims=True)
        return (x - mu) * jax.lax.rsqrt(var + eps) * g + b

    # ----------------- attention block (pre-LN), per-image batched -----------------
    ln1 = _ln(h, ln1g_ref[...], ln1b_ref[...])
    # bf16 matmul operands, f32 accumulation (MXU-native on all generations).
    qkv = jnp.dot(ln1.astype(jnp.bfloat16), qkvw_ref[...],
                  preferred_element_type=jnp.float32) + qkvb_ref[...]   # (T, 3*hidden)

    # Pad KEY columns masked so valid tokens never attend to padding; pad query
    # rows still see valid keys (no 0/0) and are dropped host-side on output.
    if seq_valid < seq_pad:
        kidx = jax.lax.broadcasted_iota(jnp.int32, (1, 1, seq_pad), 2)
        key_mask = jnp.where(kidx < seq_valid,
                             jnp.float32(0.0), jnp.float32(-1e30))
    else:
        key_mask = None

    # Static loop over heads; each head's temporaries die into the ctx_scr store.
    # 1/sqrt(hd) is already folded into the Q weight/bias columns host-side.
    for hh in range(heads):
        lo = hh * hd
        qh = qkv[:, lo:lo + hd].reshape(batch, seq_pad, hd).astype(jnp.bfloat16)
        kh = qkv[:, hidden + lo:hidden + lo + hd] \
            .reshape(batch, seq_pad, hd).astype(jnp.bfloat16)
        vh = qkv[:, 2 * hidden + lo:2 * hidden + lo + hd] \
            .reshape(batch, seq_pad, hd).astype(jnp.bfloat16)

        s = jnp.einsum('bqd,bkd->bqk', qh, kh,
                       preferred_element_type=jnp.float32)            # (B, S, S)
        if key_mask is not None:
            s = s + key_mask
        s = s - jnp.max(s, axis=-1, keepdims=True)
        p = jnp.exp(s)
        p = p * pl.reciprocal(jnp.sum(p, axis=-1, keepdims=True), approx=False)
        ctx = jnp.einsum('bqk,bkd->bqd', p.astype(jnp.bfloat16), vh,
                         preferred_element_type=jnp.float32)           # (B, S, hd)
        ctx_scr[:, lo:lo + hd] = ctx.reshape(T, hd)                    # static lane slice

    # ONE output-projection matmul with K=hidden (instead of `heads` K=hd matmuls).
    attn = jnp.dot(ctx_scr[...].astype(jnp.bfloat16), ow_ref[...],
                   preferred_element_type=jnp.float32)
    h = h + attn + ob_ref[...]

    # ----------------- MLP block (pre-LN) -----------------
    ln2 = _ln(h, ln2g_ref[...], ln2b_ref[...])
    mid = jnp.dot(ln2.astype(jnp.bfloat16), fc1w_ref[...],
                  preferred_element_type=jnp.float32) + fc1b_ref[...]
    mid = 0.5 * mid * (1.0 + jax.lax.erf(mid * (1.0 / math.sqrt(2.0))))  # exact erf-GELU (f32)
    h = h + jnp.dot(mid.astype(jnp.bfloat16), fc2w_ref[...],
                    preferred_element_type=jnp.float32) + fc2b_ref[...]

    h_scr[...] = h
    layer_out_ref[...] = h.astype(layer_out_ref.dtype)

    # Final LayerNorm only on the last layer (its output block is layer-invariant).
    @pl.when(pl.program_id(0) == pl.num_programs(0) - 1)
    def _():
        last_ref[...] = _ln(h, flng_ref[...], flnb_ref[...]).astype(last_ref.dtype)


def encoder_stack(h0, stacked, final_g, final_b, *, batch, seq_pad, seq_valid,
                  heads, eps=1e-12):
    L = stacked["qkv_w"].shape[0]
    hidden = stacked["o_w"].shape[-1]
    mlp = stacked["fc1_w"].shape[-1]
    T = batch * seq_pad
    assert T == h0.shape[0] and hidden == h0.shape[1]

    # VMEM budget: double-buffered per-layer weights + resident activations + headroom.
    per_layer_bytes = sum((v.size // L) * v.dtype.itemsize for v in stacked.values())
    act_bytes = T * hidden * 4 * 10 + T * mlp * 4 * 2 + batch * seq_pad * seq_pad * 4 * 4
    vmem_limit = min(128 << 20, max(32 << 20, 2 * per_layer_bytes + act_bytes + (16 << 20)))

    grid_spec = pltpu.PrefetchScalarGridSpec(
        num_scalar_prefetch=0,
        grid=(L,),
        in_specs=[
            pl.BlockSpec((T, hidden), lambda l: (0, 0)),                    # h0
            pl.BlockSpec((None, 1, hidden), lambda l: (l, 0, 0)),           # ln1_g
            pl.BlockSpec((None, 1, hidden), lambda l: (l, 0, 0)),           # ln1_b
            pl.BlockSpec((None, hidden, 3 * hidden), lambda l: (l, 0, 0)),  # qkv_w (bf16)
            pl.BlockSpec((None, 1, 3 * hidden), lambda l: (l, 0, 0)),       # qkv_b
            pl.BlockSpec((None, hidden, hidden), lambda l: (l, 0, 0)),      # o_w (bf16)
            pl.BlockSpec((None, 1, hidden), lambda l: (l, 0, 0)),           # o_b
            pl.BlockSpec((None, 1, hidden), lambda l: (l, 0, 0)),           # ln2_g
            pl.BlockSpec((None, 1, hidden), lambda l: (l, 0, 0)),           # ln2_b
            pl.BlockSpec((None, hidden, mlp), lambda l: (l, 0, 0)),         # fc1_w (bf16)
            pl.BlockSpec((None, 1, mlp), lambda l: (l, 0, 0)),              # fc1_b
            pl.BlockSpec((None, mlp, hidden), lambda l: (l, 0, 0)),         # fc2_w (bf16)
            pl.BlockSpec((None, 1, hidden), lambda l: (l, 0, 0)),           # fc2_b
            pl.BlockSpec((1, hidden), lambda l: (0, 0)),                    # final_ln_g
            pl.BlockSpec((1, hidden), lambda l: (0, 0)),                    # final_ln_b
        ],
        out_specs=[
            pl.BlockSpec((None, T, hidden), lambda l: (l, 0, 0)),  # per-layer hidden states
            pl.BlockSpec((T, hidden), lambda l: (0, 0)),           # final LN output
        ],
        scratch_shapes=[
            pltpu.VMEM((T, hidden), jnp.float32),   # residual stream
            pltpu.VMEM((T, hidden), jnp.float32),   # per-head context staging
        ],
    )

    # TODO(synk): for v7x, add a leading 'parallel' batch-shard grid axis so the
    # second TensorCore is used; at these shapes a single core suffices.
    return pl.pallas_call(
        functools.partial(_encoder_stack_kernel, batch=batch, seq_pad=seq_pad,
                          seq_valid=seq_valid, heads=heads, eps=eps),
        grid_spec=grid_spec,
        out_shape=(
            jax.ShapeDtypeStruct((L, T, hidden), jnp.float32),
            jax.ShapeDtypeStruct((T, hidden), jnp.float32),
        ),
        compiler_params=pltpu.CompilerParams(
            dimension_semantics=("arbitrary",),
            vmem_limit_bytes=int(vmem_limit)),
    )(
        h0,
        stacked["ln1_g"], stacked["ln1_b"],
        stacked["qkv_w"], stacked["qkv_b"],
        stacked["o_w"], stacked["o_b"],
        stacked["ln2_g"], stacked["ln2_b"],
        stacked["fc1_w"], stacked["fc1_b"],
        stacked["fc2_w"], stacked["fc2_b"],
        final_g.reshape(1, hidden), final_b.reshape(1, hidden),
    )


# ---------------------------------------------------------------------------
# Synthetic ViT parameters (deterministic), per-layer tensors pre-stacked.
# Large matmul weights are stored bf16 (streamed from HBM); the 1/sqrt(hd)
# attention scale is folded into the Q weight/bias columns here, once.
# ---------------------------------------------------------------------------

def init_vit_params(key, *, channels, patch, hidden, layers, mlp_dim,
                    num_patches, heads):
    std = 0.02
    hd = hidden // heads
    scale = 1.0 / math.sqrt(hd)
    k = jax.random.split(key, 7)

    qkv_w = jax.random.normal(k[3], (layers, hidden, 3 * hidden), jnp.float32) * std
    qkv_b = jnp.zeros((layers, 1, 3 * hidden), jnp.float32)
    # Fold attention scale into Q columns (weight AND bias).
    qkv_w = qkv_w.at[:, :, :hidden].multiply(scale)
    qkv_b = qkv_b.at[:, :, :hidden].multiply(scale)

    return {
        # conv(kernel=patch, stride=patch) == matmul with W of shape (C*P*P, hidden)
        "patch_w": jax.random.normal(k[0], (channels * patch * patch, hidden), jnp.float32) * std,
        "patch_b": jnp.zeros((hidden,), jnp.float32),
        "cls_token": jax.random.normal(k[1], (1, 1, hidden), jnp.float32) * std,
        "pos_emb": jax.random.normal(k[2], (1, num_patches + 1, hidden), jnp.float32) * std,
        "final_ln_g": jnp.ones((hidden,), jnp.float32),
        "final_ln_b": jnp.zeros((hidden,), jnp.float32),
        "layers": {
            "ln1_g": jnp.ones((layers, 1, hidden), jnp.float32),
            "ln1_b": jnp.zeros((layers, 1, hidden), jnp.float32),
            "qkv_w": qkv_w.astype(jnp.bfloat16),
            "qkv_b": qkv_b,
            "o_w": (jax.random.normal(k[4], (layers, hidden, hidden), jnp.float32) * std
                    ).astype(jnp.bfloat16),
            "o_b": jnp.zeros((layers, 1, hidden), jnp.float32),
            "ln2_g": jnp.ones((layers, 1, hidden), jnp.float32),
            "ln2_b": jnp.zeros((layers, 1, hidden), jnp.float32),
            "fc1_w": (jax.random.normal(k[5], (layers, hidden, mlp_dim), jnp.float32) * std
                      ).astype(jnp.bfloat16),
            "fc1_b": jnp.zeros((layers, 1, mlp_dim), jnp.float32),
            "fc2_w": (jax.random.normal(k[6], (layers, mlp_dim, hidden), jnp.float32) * std
                      ).astype(jnp.bfloat16),
            "fc2_b": jnp.zeros((layers, 1, hidden), jnp.float32),
        },
    }


# ---------------------------------------------------------------------------
# ViT1 forward (output_attention=False path of the PyTorch module)
# ---------------------------------------------------------------------------

def vit1_forward(x, params, *, patch, heads):
    """Returns (cls_token, patch_tokens, hidden_states) like ViT1.forward(x)."""
    B, C, H, W = x.shape
    hidden = params["patch_w"].shape[1]
    Hp, Wp = H // patch, W // patch
    Np = Hp * Wp
    S = Np + 1
    S_pad = ((S + 7) // 8) * 8          # sublane-aligned sequence length
    T = B * S_pad

    # patch extraction (== conv2d with kernel=stride=P); glue reshapes only
    patches = (x.reshape(B, C, Hp, patch, Wp, patch)
                 .transpose(0, 2, 4, 1, 3, 5)
                 .reshape(B * Np, C * patch * patch))
    emb = patch_embed(patches, params["patch_w"], params["patch_b"]).reshape(B, Np, hidden)

    cls = jnp.broadcast_to(params["cls_token"], (B, 1, hidden))
    h0 = jnp.concatenate([cls, emb], axis=1) + params["pos_emb"]        # (B, S, hidden)
    if S_pad != S:
        h0 = jnp.pad(h0, ((0, 0), (0, S_pad - S), (0, 0)))              # zero pad tokens
    h0 = h0.reshape(T, hidden)

    layer_out, last = encoder_stack(
        h0, params["layers"], params["final_ln_g"], params["final_ln_b"],
        batch=B, seq_pad=S_pad, seq_valid=S, heads=heads)

    last = last.reshape(B, S_pad, hidden)[:, :S]
    h0_b = h0.reshape(B, S_pad, hidden)[:, :S]
    hidden_states = (h0_b,) + tuple(
        layer_out[li].reshape(B, S_pad, hidden)[:, :S]
        for li in range(layer_out.shape[0]))

    # TODO(synk): output_attention=True branch (per-layer attention maps) not returned.
    return last[:, 0], last[:, 1:], hidden_states


# ---------------------------------------------------------------------------
# Main
# ---------------------------------------------------------------------------

if __name__ == "__main__":
    # small, forward-consistent shapes: 3-channel 16x16 image, 8x8 patches -> 4 patches
    B, C, H, W = 2, 3, 16, 16
    PATCH = 8
    HIDDEN = 32
    HEADS = 4
    LAYERS = 2
    MLP = 4 * HIDDEN
    NUM_PATCHES = (H // PATCH) * (W // PATCH)

    key = jax.random.PRNGKey(0)
    k_x, k_p = jax.random.split(key)
    x = jax.random.normal(k_x, (B, C, H, W), jnp.float32)
    params = init_vit_params(k_p, channels=C, patch=PATCH, hidden=HIDDEN,
                             layers=LAYERS, mlp_dim=MLP,
                             num_patches=NUM_PATCHES, heads=HEADS)

    fwd = jax.jit(functools.partial(vit1_forward, patch=PATCH, heads=HEADS))
    cls_tok, patch_toks, hidden_states = fwd(x, params)
    jax.block_until_ready((cls_tok, patch_toks, hidden_states))

    assert cls_tok.shape == (B, HIDDEN)
    assert patch_toks.shape == (B, NUM_PATCHES, HIDDEN)
    assert len(hidden_states) == LAYERS + 1
    assert all(h.shape == (B, NUM_PATCHES + 1, HIDDEN) for h in hidden_states)
    assert all(bool(jnp.isfinite(h).all()) for h in hidden_states)
    assert bool(jnp.isfinite(cls_tok).all()) and bool(jnp.isfinite(patch_toks).all())

    print("KERNEL_OK")
</pallas_src>

<mosaic_0001>
module attributes {stable_mosaic.version = 11 : i64} {
  func.func @_patch_embed_kernel(%arg0: memref<8x192xf32, #tpu.memory_space<vmem>>, %arg1: memref<192x32xf32, #tpu.memory_space<vmem>>, %arg2: memref<1x32xf32, #tpu.memory_space<vmem>>, %arg3: memref<8x32xf32, #tpu.memory_space<vmem>>) attributes {dimension_semantics = [], scalar_prefetch = 0 : i64, scratch_operands = 0 : i64, tpu.core_type = #tpu.core_type<tc>} {
    %c0 = arith.constant 0 : index
    %c0_0 = arith.constant 0 : index
    %0 = vector.load %arg0[%c0, %c0_0] : memref<8x192xf32, #tpu.memory_space<vmem>>, vector<8x192xf32>
    %c0_1 = arith.constant 0 : index
    %c0_2 = arith.constant 0 : index
    %1 = vector.load %arg1[%c0_1, %c0_2] : memref<192x32xf32, #tpu.memory_space<vmem>>, vector<192x32xf32>
    %cst = arith.constant dense<0.000000e+00> : vector<8x32xf32>
    %2 = tpu.matmul %0, %1, %cst {dimension_numbers = #tpu.dot_dimension_numbers<[1], [0], [0], [1], [0, 0, 1, 1], [], []>} : vector<8x192xf32>, vector<192x32xf32>, vector<8x32xf32> -> vector<8x32xf32>
    %c0_3 = arith.constant 0 : index
    %c0_4 = arith.constant 0 : index
    %3 = vector.load %arg2[%c0_3, %c0_4] : memref<1x32xf32, #tpu.memory_space<vmem>>, vector<1x32xf32>
    %4 = vector.broadcast %3 : vector<1x32xf32> to vector<8x32xf32>
    %5 = arith.addf %2, %4 : vector<8x32xf32>
    %c0_5 = arith.constant 0 : index
    %c0_6 = arith.constant 0 : index
    %6 = vector.load %arg3[%c0_5, %c0_6] : memref<8x32xf32, #tpu.memory_space<vmem>>, vector<8x32xf32>
    tpu.vector_store %arg3[%c0_5, %c0_6], %5 {strides = array<i32>} : memref<8x32xf32, #tpu.memory_space<vmem>>, vector<8x32xf32>,
    return
  }
}

module attributes {stable_mosaic.version = 11 : i64} {
  func.func @_encoder_stack_kernel(%arg0: i32, %arg1: memref<16x32xf32, #tpu.memory_space<vmem>>, %arg2: memref<1x1x32xf32, #tpu.memory_space<vmem>>, %arg3: memref<1x1x32xf32, #tpu.memory_space<vmem>>, %arg4: memref<1x32x96xbf16, #tpu.memory_space<vmem>>, %arg5: memref<1x1x96xf32, #tpu.memory_space<vmem>>, %arg6: memref<1x32x32xbf16, #tpu.memory_space<vmem>>, %arg7: memref<1x1x32xf32, #tpu.memory_space<vmem>>, %arg8: memref<1x1x32xf32, #tpu.memory_space<vmem>>, %arg9: memref<1x1x32xf32, #tpu.memory_space<vmem>>, %arg10: memref<1x32x128xbf16, #tpu.memory_space<vmem>>, %arg11: memref<1x1x128xf32, #tpu.memory_space<vmem>>, %arg12: memref<1x128x32xbf16, #tpu.memory_space<vmem>>, %arg13: memref<1x1x32xf32, #tpu.memory_space<vmem>>, %arg14: memref<1x32xf32, #tpu.memory_space<vmem>>, %arg15: memref<1x32xf32, #tpu.memory_space<vmem>>, %arg16: memref<1x16x32xf32, #tpu.memory_space<vmem>>, %arg17: memref<16x32xf32, #tpu.memory_space<vmem>>, %arg18: memref<16x32xf32, #tpu.memory_space<vmem>>, %arg19: memref<16x32xf32, #tpu.memory_space<vmem>>) attributes {dimension_semantics = [#tpu.dimension_semantics<arbitrary>], iteration_bounds = array<i64: 2>, scalar_prefetch = 0 : i64, scratch_operands = 2 : i64, tpu.core_type = #tpu.core_type<tc>, window_params = [{pipeline_mode = #tpu.pipeline_mode<synchronous>, transform_indices = @transform_0, window_bounds = array<i64: 16, 32>}, {transform_indices = @transform_1, window_bounds = array<i64: 1, 1, 32>}, {transform_indices = @transform_2, window_bounds = array<i64: 1, 1, 32>}, {transform_indices = @transform_3, window_bounds = array<i64: 1, 32, 96>}, {transform_indices = @transform_4, window_bounds = array<i64: 1, 1, 96>}, {transform_indices = @transform_5, window_bounds = array<i64: 1, 32, 32>}, {transform_indices = @transform_6, window_bounds = array<i64: 1, 1, 32>}, {transform_indices = @transform_7, window_bounds = array<i64: 1, 1, 32>}, {transform_indices = @transform_8, window_bounds = array<i64: 1, 1, 32>}, {transform_indices = @transform_9, window_bounds = array<i64: 1, 32, 128>}, {transform_indices = @transform_10, window_bounds = array<i64: 1, 1, 128>}, {transform_indices = @transform_11, window_bounds = array<i64: 1, 128, 32>}, {transform_indices = @transform_12, window_bounds = array<i64: 1, 1, 32>}, {pipeline_mode = #tpu.pipeline_mode<synchronous>, transform_indices = @transform_13, window_bounds = array<i64: 1, 32>}, {pipeline_mode = #tpu.pipeline_mode<synchronous>, transform_indices = @transform_14, window_bounds = array<i64: 1, 32>}, {transform_indices = @transform_15, window_bounds = array<i64: 1, 16, 32>}, {pipeline_mode = #tpu.pipeline_mode<synchronous>, transform_indices = @transform_16, window_bounds = array<i64: 16, 32>}]} {
    %c0_i32 = arith.constant 0 : i32
    %0 = arith.cmpi eq, %arg0, %c0_i32 : i32
    %1 = arith.extui %0 : i1 to i32
    %c0_i32_0 = arith.constant 0 : i32
    %2 = arith.cmpi ne, %1, %c0_i32_0 : i32
    scf.if %2 {
      %c0_85 = arith.constant 0 : index
      %c0_86 = arith.constant 0 : index
      %216 = vector.load %arg1[%c0_85, %c0_86] : memref<16x32xf32, #tpu.memory_space<vmem>>, vector<16x32xf32>
      %c0_87 = arith.constant 0 : index
      %c0_88 = arith.constant 0 : index
      %217 = vector.load %arg18[%c0_87, %c0_88] : memref<16x32xf32, #tpu.memory_space<vmem>>, vector<16x32xf32>
      tpu.vector_store %arg18[%c0_87, %c0_88], %216 {strides = array<i32>} : memref<16x32xf32, #tpu.memory_space<vmem>>, vector<16x32xf32>,
    } else {
    }
    %c0 = arith.constant 0 : index
    %c0_1 = arith.constant 0 : index
    %3 = vector.load %arg18[%c0, %c0_1] : memref<16x32xf32, #tpu.memory_space<vmem>>, vector<16x32xf32>
    %c0_2 = arith.constant 0 : index
    %c0_3 = arith.constant 0 : index
    %c0_4 = arith.constant 0 : index
    %4 = vector.load %arg2[%c0_2, %c0_3, %c0_4] : memref<1x1x32xf32, #tpu.memory_space<vmem>>, vector<1x1x32xf32>
    %5 = vector.shape_cast %4 : vector<1x1x32xf32> to vector<1x32xf32>
    %c0_5 = arith.constant 0 : index
    %c0_6 = arith.constant 0 : index
    %c0_7 = arith.constant 0 : index
    %6 = vector.load %arg3[%c0_5, %c0_6, %c0_7] : memref<1x1x32xf32, #tpu.memory_space<vmem>>, vector<1x1x32xf32>
    %7 = vector.shape_cast %6 : vector<1x1x32xf32> to vector<1x32xf32>
    %cst = arith.constant dense<0.000000e+00> : vector<16xf32>
    %8 = vector.multi_reduction <add>, %3, %cst [1] : vector<16x32xf32> to vector<16xf32>
    %9 = vector.shape_cast %8 : vector<16xf32> to vector<16x1xf32>
    %cst_8 = arith.constant 3.200000e+01 : f32
    %10 = vector.broadcast %cst_8 : f32 to vector<16x1xf32>
    %11 = arith.divf %9, %10 : vector<16x1xf32>
    %12 = vector.broadcast %11 : vector<16x1xf32> to vector<16x32xf32>
    %13 = arith.subf %3, %12 : vector<16x32xf32>
    %14 = arith.mulf %13, %13 : vector<16x32xf32>
    %cst_9 = arith.constant dense<0.000000e+00> : vector<16xf32>
    %15 = vector.multi_reduction <add>, %14, %cst_9 [1] : vector<16x32xf32> to vector<16xf32>
    %16 = vector.shape_cast %15 : vector<16xf32> to vector<16x1xf32>
    %cst_10 = arith.constant 3.200000e+01 : f32
    %17 = vector.broadcast %cst_10 : f32 to vector<16x1xf32>
    %18 = arith.divf %16, %17 : vector<16x1xf32>
    %19 = vector.broadcast %11 : vector<16x1xf32> to vector<16x32xf32>
    %20 = arith.subf %3, %19 : vector<16x32xf32>
    %cst_11 = arith.constant 9.99999996E-13 : f32
    %21 = vector.broadcast %cst_11 : f32 to vector<16x1xf32>
    %22 = arith.addf %18, %21 : vector<16x1xf32>
    %23 = math.rsqrt %22 : vector<16x1xf32>
    %24 = vector.broadcast %23 : vector<16x1xf32> to vector<16x32xf32>
    %25 = arith.mulf %20, %24 : vector<16x32xf32>
    %26 = vector.broadcast %5 : vector<1x32xf32> to vector<16x32xf32>
    %27 = arith.mulf %25, %26 : vector<16x32xf32>
    %28 = vector.broadcast %7 : vector<1x32xf32> to vector<16x32xf32>
    %29 = arith.addf %27, %28 : vector<16x32xf32>
    %30 = arith.truncf %29 : vector<16x32xf32> to vector<16x32xbf16>
    %c0_12 = arith.constant 0 : index
    %c0_13 = arith.constant 0 : index
    %c0_14 = arith.constant 0 : index
    %31 = vector.load %arg4[%c0_12, %c0_13, %c0_14] : memref<1x32x96xbf16, #tpu.memory_space<vmem>>, vector<1x32x96xbf16>
    %32 = vector.shape_cast %31 : vector<1x32x96xbf16> to vector<32x96xbf16>
    %cst_15 = arith.constant dense<0.000000e+00> : vector<16x96xf32>
    %33 = tpu.matmul %30, %32, %cst_15 {dimension_numbers = #tpu.dot_dimension_numbers<[1], [0], [0], [1], [0, 0, 1, 1], [], []>} : vector<16x32xbf16>, vector<32x96xbf16>, vector<16x96xf32> -> vector<16x96xf32>
    %c0_16 = arith.constant 0 : index
    %c0_17 = arith.constant 0 : index
    %c0_18 = arith.constant 0 : index
    %34 = vector.load %arg5[%c0_16, %c0_17, %c0_18] : memref<1x1x96xf32, #tpu.memory_space<vmem>>, vector<1x1x96xf32>
    %35 = vector.shape_cast %34 : vector<1x1x96xf32> to vector<1x96xf32>
    %36 = vector.broadcast %35 : vector<1x96xf32> to vector<16x96xf32>
    %37 = arith.addf %33, %36 : vector<16x96xf32>
    %38 = tpu.iota {dimensions = array<i32: 2>} : vector<1x1x8xi32>
    %c5_i32 = arith.constant 5 : i32
    %39 = vector.broadcast %c5_i32 : i32 to vector<1x1x8xi32>
    %40 = arith.cmpi slt, %38, %39 : vector<1x1x8xi32>
    %cst_19 = arith.constant 0.000000e+00 : f32
    %cst_20 = arith.constant -1.000000e+30 : f32
    %41 = vector.broadcast %cst_19 : f32 to vector<1x1x8xf32>
    %42 = vector.broadcast %cst_20 : f32 to vector<1x1x8xf32>
    %43 = arith.select %40, %41, %42 : vector<1x1x8xi1>, vector<1x1x8xf32>
    %44 = vector.extract_strided_slice %37 {offsets = [0, 0], sizes = [16, 8], strides = [1, 1]} : vector<16x96xf32> to vector<16x8xf32>
    %45 = vector.shape_cast %44 : vector<16x8xf32> to vector<2x8x8xf32>
    %46 = arith.truncf %45 : vector<2x8x8xf32> to vector<2x8x8xbf16>
    %47 = vector.extract_strided_slice %37 {offsets = [0, 32], sizes = [16, 8], strides = [1, 1]} : vector<16x96xf32> to vector<16x8xf32>
    %48 = vector.shape_cast %47 : vector<16x8xf32> to vector<2x8x8xf32>
    %49 = arith.truncf %48 : vector<2x8x8xf32> to vector<2x8x8xbf16>
    %50 = vector.extract_strided_slice %37 {offsets = [0, 64], sizes = [16, 8], strides = [1, 1]} : vector<16x96xf32> to vector<16x8xf32>
    %51 = vector.shape_cast %50 : vector<16x8xf32> to vector<2x8x8xf32>
    %52 = arith.truncf %51 : vector<2x8x8xf32> to vector<2x8x8xbf16>
    "tpu.trace_start"() <{level = 10 : i32, message = "bqd,bkd->bqk"}> : () -> ()
    %cst_21 = arith.constant dense<0.000000e+00> : vector<2x8x8xf32>
    %53 = tpu.matmul %46, %49, %cst_21 {dimension_numbers = #tpu.dot_dimension_numbers<[2], [2], [1], [1], [0, 0, 0, 1, 1, 1], [0], [0]>} : vector<2x8x8xbf16>, vector<2x8x8xbf16>, vector<2x8x8xf32> -> vector<2x8x8xf32>
    "tpu.trace_stop"() : () -> ()
    %54 = vector.broadcast %43 : vector<1x1x8xf32> to vector<2x8x8xf32>
    %55 = arith.addf %53, %54 : vector<2x8x8xf32>
    %cst_22 = arith.constant dense<0xFF800000> : vector<2x8xf32>
    %56 = vector.multi_reduction <maximumf>, %55, %cst_22 [2] : vector<2x8x8xf32> to vector<2x8xf32>
    %57 = vector.shape_cast %56 : vector<2x8xf32> to vector<2x8x1xf32>
    %58 = vector.broadcast %57 : vector<2x8x1xf32> to vector<2x8x8xf32>
    %59 = arith.subf %55, %58 : vector<2x8x8xf32>
    %60 = math.exp %59 : vector<2x8x8xf32>
    %cst_23 = arith.constant dense<0.000000e+00> : vector<2x8xf32>
    %61 = vector.multi_reduction <add>, %60, %cst_23 [2] : vector<2x8x8xf32> to vector<2x8xf32>
    %62 = vector.shape_cast %61 : vector<2x8xf32> to vector<2x8x1xf32>
    %63 = tpu.reciprocal %62 : vector<2x8x1xf32> -> vector<2x8x1xf32>
    %64 = vector.broadcast %63 : vector<2x8x1xf32> to vector<2x8x8xf32>
    %65 = arith.mulf %60, %64 : vector<2x8x8xf32>
    %66 = arith.truncf %65 : vector<2x8x8xf32> to vector<2x8x8xbf16>
    "tpu.trace_start"() <{level = 10 : i32, message = "bqk,bkd->bqd"}> : () -> ()
    %cst_24 = arith.constant dense<0.000000e+00> : vector<2x8x8xf32>
    %67 = tpu.matmul %66, %52, %cst_24 {dimension_numbers = #tpu.dot_dimension_numbers<[2], [1], [1], [2], [0, 0, 0, 1, 1, 2], [0], [0]>} : vector<2x8x8xbf16>, vector<2x8x8xbf16>, vector<2x8x8xf32> -> vector<2x8x8xf32>
    "tpu.trace_stop"() : () -> ()
    %68 = vector.shape_cast %67 : vector<2x8x8xf32> to vector<16x8xf32>
    %c0_25 = arith.constant 0 : index
    %c0_26 = arith.constant 0 : index
    %69 = vector.load %arg19[%c0_25, %c0_26] : memref<16x32xf32, #tpu.memory_space<vmem>>, vector<16x8xf32>
    tpu.vector_store %arg19[%c0_25, %c0_26], %68 {strides = array<i32>} : memref<16x32xf32, #tpu.memory_space<vmem>>, vector<16x8xf32>,
    %70 = vector.extract_strided_slice %37 {offsets = [0, 8], sizes = [16, 8], strides = [1, 1]} : vector<16x96xf32> to vector<16x8xf32>
    %71 = vector.shape_cast %70 : vector<16x8xf32> to vector<2x8x8xf32>
    %72 = arith.truncf %71 : vector<2x8x8xf32> to vector<2x8x8xbf16>
    %73 = vector.extract_strided_slice %37 {offsets = [0, 40], sizes = [16, 8], strides = [1, 1]} : vector<16x96xf32> to vector<16x8xf32>
    %74 = vector.shape_cast %73 : vector<16x8xf32> to vector<2x8x8xf32>
    %75 = arith.truncf %74 : vector<2x8x8xf32> to vector<2x8x8xbf16>
    %76 = vector.extract_strided_slice %37 {offsets = [0, 72], sizes = [16, 8], strides = [1, 1]} : vector<16x96xf32> to vector<16x8xf32>
    %77 = vector.shape_cast %76 : vector<16x8xf32> to vector<2x8x8xf32>
    %78 = arith.truncf %77 : vector<2x8x8xf32> to vector<2x8x8xbf16>
    "tpu.trace_start"() <{level = 10 : i32, message = "bqd,bkd->bqk"}> : () -> ()
    %cst_27 = arith.constant dense<0.000000e+00> : vector<2x8x8xf32>
    %79 = tpu.matmul %72, %75, %cst_27 {dimension_numbers = #tpu.dot_dimension_numbers<[2], [2], [1], [1], [0, 0, 0, 1, 1, 1], [0], [0]>} : vector<2x8x8xbf16>, vector<2x8x8xbf16>, vector<2x8x8xf32> -> vector<2x8x8xf32>
    "tpu.trace_stop"() : () -> ()
    %80 = vector.broadcast %43 : vector<1x1x8xf32> to vector<2x8x8xf32>
    %81 = arith.addf %79, %80 : vector<2x8x8xf32>
    %cst_28 = arith.constant dense<0xFF800000> : vector<2x8xf32>
    %82 = vector.multi_reduction <maximumf>, %81, %cst_28 [2] : vector<2x8x8xf32> to vector<2x8xf32>
    %83 = vector.shape_cast %82 : vector<2x8xf32> to vector<2x8x1xf32>
    %84 = vector.broadcast %83 : vector<2x8x1xf32> to vector<2x8x8xf32>
    %85 = arith.subf %81, %84 : vector<2x8x8xf32>
    %86 = math.exp %85 : vector<2x8x8xf32>
    %cst_29 = arith.constant dense<0.000000e+00> : vector<2x8xf32>
    %87 = vector.multi_reduction <add>, %86, %cst_29 [2] : vector<2x8x8xf32> to vector<2x8xf32>
    %88 = vector.shape_cast %87 : vector<2x8xf32> to vector<2x8x1xf32>
    %89 = tpu.reciprocal %88 : vector<2x8x1xf32> -> vector<2x8x1xf32>
    %90 = vector.broadcast %89 : vector<2x8x1xf32> to vector<2x8x8xf32>
    %91 = arith.mulf %86, %90 : vector<2x8x8xf32>
    %92 = arith.truncf %91 : vector<2x8x8xf32> to vector<2x8x8xbf16>
    "tpu.trace_start"() <{level = 10 : i32, message = "bqk,bkd->bqd"}> : () -> ()
    %cst_30 = arith.constant dense<0.000000e+00> : vector<2x8x8xf32>
    %93 = tpu.matmul %92, %78, %cst_30 {dimension_numbers = #tpu.dot_dimension_numbers<[2], [1], [1], [2], [0, 0, 0, 1, 1, 2], [0], [0]>} : vector<2x8x8xbf16>, vector<2x8x8xbf16>, vector<2x8x8xf32> -> vector<2x8x8xf32>
    "tpu.trace_stop"() : () -> ()
    %94 = vector.shape_cast %93 : vector<2x8x8xf32> to vector<16x8xf32>
    %c0_31 = arith.constant 0 : index
    %c8 = arith.constant 8 : index
    %95 = vector.load %arg19[%c0_31, %c8] : memref<16x32xf32, #tpu.memory_space<vmem>>, vector<16x8xf32>
    tpu.vector_store %arg19[%c0_31, %c8], %94 {strides = array<i32>} : memref<16x32xf32, #tpu.memory_space<vmem>>, vector<16x8xf32>,
    %96 = vector.extract_strided_slice %37 {offsets = [0, 16], sizes = [16, 8], strides = [1, 1]} : vector<16x96xf32> to vector<16x8xf32>
    %97 = vector.shape_cast %96 : vector<16x8xf32> to vector<2x8x8xf32>
    %98 = arith.truncf %97 : vector<2x8x8xf32> to vector<2x8x8xbf16>
    %99 = vector.extract_strided_slice %37 {offsets = [0, 48], sizes = [16, 8], strides = [1, 1]} : vector<16x96xf32> to vector<16x8xf32>
    %100 = vector.shape_cast %99 : vector<16x8xf32> to vector<2x8x8xf32>
    %101 = arith.truncf %100 : vector<2x8x8xf32> to vector<2x8x8xbf16>
    %102 = vector.extract_strided_slice %37 {offsets = [0, 80], sizes = [16, 8], strides = [1, 1]} : vector<16x96xf32> to vector<16x8xf32>
    %103 = vector.shape_cast %102 : vector<16x8xf32> to vector<2x8x8xf32>
    %104 = arith.truncf %103 : vector<2x8x8xf32> to vector<2x8x8xbf16>
    "tpu.trace_start"() <{level = 10 : i32, message = "bqd,bkd->bqk"}> : () -> ()
    %cst_32 = arith.constant dense<0.000000e+00> : vector<2x8x8xf32>
    %105 = tpu.matmul %98, %101, %cst_32 {dimension_numbers = #tpu.dot_dimension_numbers<[2], [2], [1], [1], [0, 0, 0, 1, 1, 1], [0], [0]>} : vector<2x8x8xbf16>, vector<2x8x8xbf16>, vector<2x8x8xf32> -> vector<2x8x8xf32>
    "tpu.trace_stop"() : () -> ()
    %106 = vector.broadcast %43 : vector<1x1x8xf32> to vector<2x8x8xf32>
    %107 = arith.addf %105, %106 : vector<2x8x8xf32>
    %cst_33 = arith.constant dense<0xFF800000> : vector<2x8xf32>
    %108 = vector.multi_reduction <maximumf>, %107, %cst_33 [2] : vector<2x8x8xf32> to vector<2x8xf32>
    %109 = vector.shape_cast %108 : vector<2x8xf32> to vector<2x8x1xf32>
    %110 = vector.broadcast %109 : vector<2x8x1xf32> to vector<2x8x8xf32>
    %111 = arith.subf %107, %110 : vector<2x8x8xf32>
    %112 = math.exp %111 : vector<2x8x8xf32>
    %cst_34 = arith.constant dense<0.000000e+00> : vector<2x8xf32>
    %113 = vector.multi_reduction <add>, %112, %cst_34 [2] : vector<2x8x8xf32> to vector<2x8xf32>
    %114 = vector.shape_cast %113 : vector<2x8xf32> to vector<2x8x1xf32>
    %115 = tpu.reciprocal %114 : vector<2x8x1xf32> -> vector<2x8x1xf32>
    %116 = vector.broadcast %115 : vector<2x8x1xf32> to vector<2x8x8xf32>
    %117 = arith.mulf %112, %116 : vector<2x8x8xf32>
    %118 = arith.truncf %117 : vector<2x8x8xf32> to vector<2x8x8xbf16>
    "tpu.trace_start"() <{level = 10 : i32, message = "bqk,bkd->bqd"}> : () -> ()
    %cst_35 = arith.constant dense<0.000000e+00> : vector<2x8x8xf32>
    %119 = tpu.matmul %118, %104, %cst_35 {dimension_numbers = #tpu.dot_dimension_numbers<[2], [1], [1], [2], [0, 0, 0, 1, 1, 2], [0], [0]>} : vector<2x8x8xbf16>, vector<2x8x8xbf16>, vector<2x8x8xf32> -> vector<2x8x8xf32>
    "tpu.trace_stop"() : () -> ()
    %120 = vector.shape_cast %119 : vector<2x8x8xf32> to vector<16x8xf32>
    %c0_36 = arith.constant 0 : index
    %c16 = arith.constant 16 : index
    %121 = vector.load %arg19[%c0_36, %c16] : memref<16x32xf32, #tpu.memory_space<vmem>>, vector<16x8xf32>
    tpu.vector_store %arg19[%c0_36, %c16], %120 {strides = array<i32>} : memref<16x32xf32, #tpu.memory_space<vmem>>, vector<16x8xf32>,
    %122 = vector.extract_strided_slice %37 {offsets = [0, 24], sizes = [16, 8], strides = [1, 1]} : vector<16x96xf32> to vector<16x8xf32>
    %123 = vector.shape_cast %122 : vector<16x8xf32> to vector<2x8x8xf32>
    %124 = arith.truncf %123 : vector<2x8x8xf32> to vector<2x8x8xbf16>
    %125 = vector.extract_strided_slice %37 {offsets = [0, 56], sizes = [16, 8], strides = [1, 1]} : vector<16x96xf32> to vector<16x8xf32>
    %126 = vector.shape_cast %125 : vector<16x8xf32> to vector<2x8x8xf32>
    %127 = arith.truncf %126 : vector<2x8x8xf32> to vector<2x8x8xbf16>
    %128 = vector.extract_strided_slice %37 {offsets = [0, 88], sizes = [16, 8], strides = [1, 1]} : vector<16x96xf32> to vector<16x8xf32>
    %129 = vector.shape_cast %128 : vector<16x8xf32> to vector<2x8x8xf32>
    %130 = arith.truncf %129 : vector<2x8x8xf32> to vector<2x8x8xbf16>
    "tpu.trace_start"() <{level = 10 : i32, message = "bqd,bkd->bqk"}> : () -> ()
    %cst_37 = arith.constant dense<0.000000e+00> : vector<2x8x8xf32>
    %131 = tpu.matmul %124, %127, %cst_37 {dimension_numbers = #tpu.dot_dimension_numbers<[2], [2], [1], [1], [0, 0, 0, 1, 1, 1], [0], [0]>} : vector<2x8x8xbf16>, vector<2x8x8xbf16>, vector<2x8x8xf32> -> vector<2x8x8xf32>
    "tpu.trace_stop"() : () -> ()
    %132 = vector.broadcast %43 : vector<1x1x8xf32> to vector<2x8x8xf32>
    %133 = arith.addf %131, %132 : vector<2x8x8xf32>
    %cst_38 = arith.constant dense<0xFF800000> : vector<2x8xf32>
    %134 = vector.multi_reduction <maximumf>, %133, %cst_38 [2] : vector<2x8x8xf32> to vector<2x8xf32>
    %135 = vector.shape_cast %134 : vector<2x8xf32> to vector<2x8x1xf32>
    %136 = vector.broadcast %135 : vector<2x8x1xf32> to vector<2x8x8xf32>
    %137 = arith.subf %133, %136 : vector<2x8x8xf32>
    %138 = math.exp %137 : vector<2x8x8xf32>
    %cst_39 = arith.constant dense<0.000000e+00> : vector<2x8xf32>
    %139 = vector.multi_reduction <add>, %138, %cst_39 [2] : vector<2x8x8xf32> to vector<2x8xf32>
    %140 = vector.shape_cast %139 : vector<2x8xf32> to vector<2x8x1xf32>
    %141 = tpu.reciprocal %140 : vector<2x8x1xf32> -> vector<2x8x1xf32>
    %142 = vector.broadcast %141 : vector<2x8x1xf32> to vector<2x8x8xf32>
    %143 = arith.mulf %138, %142 : vector<2x8x8xf32>
    %144 = arith.truncf %143 : vector<2x8x8xf32> to vector<2x8x8xbf16>
    "tpu.trace_start"() <{level = 10 : i32, message = "bqk,bkd->bqd"}> : () -> ()
    %cst_40 = arith.constant dense<0.000000e+00> : vector<2x8x8xf32>
    %145 = tpu.matmul %144, %130, %cst_40 {dimension_numbers = #tpu.dot_dimension_numbers<[2], [1], [1], [2], [0, 0, 0, 1, 1, 2], [0], [0]>} : vector<2x8x8xbf16>, vector<2x8x8xbf16>, vector<2x8x8xf32> -> vector<2x8x8xf32>
    "tpu.trace_stop"() : () -> ()
    %146 = vector.shape_cast %145 : vector<2x8x8xf32> to vector<16x8xf32>
    %c0_41 = arith.constant 0 : index
    %c24 = arith.constant 24 : index
    %147 = vector.load %arg19[%c0_41, %c24] : memref<16x32xf32, #tpu.memory_space<vmem>>, vector<16x8xf32>
    tpu.vector_store %arg19[%c0_41, %c24], %146 {strides = array<i32>} : memref<16x32xf32, #tpu.memory_space<vmem>>, vector<16x8xf32>,
    %c0_42 = arith.constant 0 : index
    %c0_43 = arith.constant 0 : index
    %148 = vector.load %arg19[%c0_42, %c0_43] : memref<16x32xf32, #tpu.memory_space<vmem>>, vector<16x32xf32>
    %149 = arith.truncf %148 : vector<16x32xf32> to vector<16x32xbf16>
    %c0_44 = arith.constant 0 : index
    %c0_45 = arith.constant 0 : index
    %c0_46 = arith.constant 0 : index
    %150 = vector.load %arg6[%c0_44, %c0_45, %c0_46] : memref<1x32x32xbf16, #tpu.memory_space<vmem>>, vector<1x32x32xbf16>
    %151 = vector.shape_cast %150 : vector<1x32x32xbf16> to vector<32x32xbf16>
    %cst_47 = arith.constant dense<0.000000e+00> : vector<16x32xf32>
    %152 = tpu.matmul %149, %151, %cst_47 {dimension_numbers = #tpu.dot_dimension_numbers<[1], [0], [0], [1], [0, 0, 1, 1], [], []>} : vector<16x32xbf16>, vector<32x32xbf16>, vector<16x32xf32> -> vector<16x32xf32>
    %153 = arith.addf %3, %152 : vector<16x32xf32>
    %c0_48 = arith.constant 0 : index
    %c0_49 = arith.constant 0 : index
    %c0_50 = arith.constant 0 : index
    %154 = vector.load %arg7[%c0_48, %c0_49, %c0_50] : memref<1x1x32xf32, #tpu.memory_space<vmem>>, vector<1x1x32xf32>
    %155 = vector.shape_cast %154 : vector<1x1x32xf32> to vector<1x32xf32>
    %156 = vector.broadcast %155 : vector<1x32xf32> to vector<16x32xf32>
    %157 = arith.addf %153, %156 : vector<16x32xf32>
    %c0_51 = arith.constant 0 : index
    %c0_52 = arith.constant 0 : index
    %c0_53 = arith.constant 0 : index
    %158 = vector.load %arg8[%c0_51, %c0_52, %c0_53] : memref<1x1x32xf32, #tpu.memory_space<vmem>>, vector<1x1x32xf32>
    %159 = vector.shape_cast %158 : vector<1x1x32xf32> to vector<1x32xf32>
    %c0_54 = arith.constant 0 : index
    %c0_55 = arith.constant 0 : index
    %c0_56 = arith.constant 0 : index
    %160 = vector.load %arg9[%c0_54, %c0_55, %c0_56] : memref<1x1x32xf32, #tpu.memory_space<vmem>>, vector<1x1x32xf32>
    %161 = vector.shape_cast %160 : vector<1x1x32xf32> to vector<1x32xf32>
    %cst_57 = arith.constant dense<0.000000e+00> : vector<16xf32>
    %162 = vector.multi_reduction <add>, %157, %cst_57 [1] : vector<16x32xf32> to vector<16xf32>
    %163 = vector.shape_cast %162 : vector<16xf32> to vector<16x1xf32>
    %cst_58 = arith.constant 3.200000e+01 : f32
    %164 = vector.broadcast %cst_58 : f32 to vector<16x1xf32>
    %165 = arith.divf %163, %164 : vector<16x1xf32>
    %166 = vector.broadcast %165 : vector<16x1xf32> to vector<16x32xf32>
    %167 = arith.subf %157, %166 : vector<16x32xf32>
    %168 = arith.mulf %167, %167 : vector<16x32xf32>
    %cst_59 = arith.constant dense<0.000000e+00> : vector<16xf32>
    %169 = vector.multi_reduction <add>, %168, %cst_59 [1] : vector<16x32xf32> to vector<16xf32>
    %170 = vector.shape_cast %169 : vector<16xf32> to vector<16x1xf32>
    %cst_60 = arith.constant 3.200000e+01 : f32
    %171 = vector.broadcast %cst_60 : f32 to vector<16x1xf32>
    %172 = arith.divf %170, %171 : vector<16x1xf32>
    %173 = vector.broadcast %165 : vector<16x1xf32> to vector<16x32xf32>
    %174 = arith.subf %157, %173 : vector<16x32xf32>
    %cst_61 = arith.constant 9.99999996E-13 : f32
    %175 = vector.broadcast %cst_61 : f32 to vector<16x1xf32>
    %176 = arith.addf %172, %175 : vector<16x1xf32>
    %177 = math.rsqrt %176 : vector<16x1xf32>
    %178 = vector.broadcast %177 : vector<16x1xf32> to vector<16x32xf32>
    %179 = arith.mulf %174, %178 : vector<16x32xf32>
    %180 = vector.broadcast %159 : vector<1x32xf32> to vector<16x32xf32>
    %181 = arith.mulf %179, %180 : vector<16x32xf32>
    %182 = vector.broadcast %161 : vector<1x32xf32> to vector<16x32xf32>
    %183 = arith.addf %181, %182 : vector<16x32xf32>
    %184 = arith.truncf %183 : vector<16x32xf32> to vector<16x32xbf16>
    %c0_62 = arith.constant 0 : index
    %c0_63 = arith.constant 0 : index
    %c0_64 = arith.constant 0 : index
    %185 = vector.load %arg10[%c0_62, %c0_63, %c0_64] : memref<1x32x128xbf16, #tpu.memory_space<vmem>>, vector<1x32x128xbf16>
    %186 = vector.shape_cast %185 : vector<1x32x128xbf16> to vector<32x128xbf16>
    %cst_65 = arith.constant dense<0.000000e+00> : vector<16x128xf32>
    %187 = tpu.matmul %184, %186, %cst_65 {dimension_numbers = #tpu.dot_dimension_numbers<[1], [0], [0], [1], [0, 0, 1, 1], [], []>} : vector<16x32xbf16>, vector<32x128xbf16>, vector<16x128xf32> -> vector<16x128xf32>
    %c0_66 = arith.constant 0 : index
    %c0_67 = arith.constant 0 : index
    %c0_68 = arith.constant 0 : index
    %188 = vector.load %arg11[%c0_66, %c0_67, %c0_68] : memref<1x1x128xf32, #tpu.memory_space<vmem>>, vector<1x1x128xf32>
    %189 = vector.shape_cast %188 : vector<1x1x128xf32> to vector<1x128xf32>
    %190 = vector.broadcast %189 : vector<1x128xf32> to vector<16x128xf32>
    %191 = arith.addf %187, %190 : vector<16x128xf32>
    %cst_69 = arith.constant 5.000000e-01 : f32
    %192 = vector.broadcast %cst_69 : f32 to vector<16x128xf32>
    %193 = arith.mulf %192, %191 : vector<16x128xf32>
    %cst_70 = arith.constant 0.707106769 : f32
    %194 = vector.broadcast %cst_70 : f32 to vector<16x128xf32>
    %195 = arith.mulf %191, %194 : vector<16x128xf32>
    %196 = math.erf %195 : vector<16x128xf32>
    %cst_71 = arith.constant 1.000000e+00 : f32
    %197 = vector.broadcast %cst_71 : f32 to vector<16x128xf32>
    %198 = arith.addf %197, %196 : vector<16x128xf32>
    %199 = arith.mulf %193, %198 : vector<16x128xf32>
    %200 = arith.truncf %199 : vector<16x128xf32> to vector<16x128xbf16>
    %c0_72 = arith.constant 0 : index
    %c0_73 = arith.constant 0 : index
    %c0_74 = arith.constant 0 : index
    %201 = vector.load %arg12[%c0_72, %c0_73, %c0_74] : memref<1x128x32xbf16, #tpu.memory_space<vmem>>, vector<1x128x32xbf16>
    %202 = vector.shape_cast %201 : vector<1x128x32xbf16> to vector<128x32xbf16>
    %cst_75 = arith.constant dense<0.000000e+00> : vector<16x32xf32>
    %203 = tpu.matmul %200, %202, %cst_75 {dimension_numbers = #tpu.dot_dimension_numbers<[1], [0], [0], [1], [0, 0, 1, 1], [], []>} : vector<16x128xbf16>, vector<128x32xbf16>, vector<16x32xf32> -> vector<16x32xf32>
    %204 = arith.addf %157, %203 : vector<16x32xf32>
    %c0_76 = arith.constant 0 : index
    %c0_77 = arith.constant 0 : index
    %c0_78 = arith.constant 0 : index
    %205 = vector.load %arg13[%c0_76, %c0_77, %c0_78] : memref<1x1x32xf32, #tpu.memory_space<vmem>>, vector<1x1x32xf32>
    %206 = vector.shape_cast %205 : vector<1x1x32xf32> to vector<1x32xf32>
    %207 = vector.broadcast %206 : vector<1x32xf32> to vector<16x32xf32>
    %208 = arith.addf %204, %207 : vector<16x32xf32>
    %c0_79 = arith.constant 0 : index
    %c0_80 = arith.constant 0 : index
    %209 = vector.load %arg18[%c0_79, %c0_80] : memref<16x32xf32, #tpu.memory_space<vmem>>, vector<16x32xf32>
    tpu.vector_store %arg18[%c0_79, %c0_80], %208 {strides = array<i32>} : memref<16x32xf32, #tpu.memory_space<vmem>>, vector<16x32xf32>,
    %c0_81 = arith.constant 0 : index
    %c0_82 = arith.constant 0 : index
    %c0_83 = arith.constant 0 : index
    %210 = vector.load %arg16[%c0_81, %c0_82, %c0_83] : memref<1x16x32xf32, #tpu.memory_space<vmem>>, vector<1x16x32xf32>
    %211 = vector.shape_cast %210 : vector<1x16x32xf32> to vector<16x32xf32>
    %212 = vector.shape_cast %208 : vector<16x32xf32> to vector<1x16x32xf32>
    tpu.vector_store %arg16[%c0_81, %c0_82, %c0_83], %212 {strides = array<i32>} : memref<1x16x32xf32, #tpu.memory_space<vmem>>, vector<1x16x32xf32>,
    %c1_i32 = arith.constant 1 : i32
    %213 = arith.cmpi eq, %arg0, %c1_i32 : i32
    %214 = arith.extui %213 : i1 to i32
    %c0_i32_84 = arith.constant 0 : i32
    %215 = arith.cmpi ne, %214, %c0_i32_84 : i32
    scf.if %215 {
      %c0_85 = arith.constant 0 : index
      %c0_86 = arith.constant 0 : index
      %216 = vector.load %arg14[%c0_85, %c0_86] : memref<1x32xf32, #tpu.memory_space<vmem>>, vector<1x32xf32>
      %c0_87 = arith.constant 0 : index
      %c0_88 = arith.constant 0 : index
      %217 = vector.load %arg15[%c0_87, %c0_88] : memref<1x32xf32, #tpu.memory_space<vmem>>, vector<1x32xf32>
      %cst_89 = arith.constant dense<0.000000e+00> : vector<16xf32>
      %218 = vector.multi_reduction <add>, %208, %cst_89 [1] : vector<16x32xf32> to vector<16xf32>
      %219 = vector.shape_cast %218 : vector<16xf32> to vector<16x1xf32>
      %cst_90 = arith.constant 3.200000e+01 : f32
      %220 = vector.broadcast %cst_90 : f32 to vector<16x1xf32>
      %221 = arith.divf %219, %220 : vector<16x1xf32>
      %222 = vector.broadcast %221 : vector<16x1xf32> to vector<16x32xf32>
      %223 = arith.subf %208, %222 : vector<16x32xf32>
      %224 = arith.mulf %223, %223 : vector<16x32xf32>
      %cst_91 = arith.constant dense<0.000000e+00> : vector<16xf32>
      %225 = vector.multi_reduction <add>, %224, %cst_91 [1] : vector<16x32xf32> to vector<16xf32>
      %226 = vector.shape_cast %225 : vector<16xf32> to vector<16x1xf32>
      %cst_92 = arith.constant 3.200000e+01 : f32
      %227 = vector.broadcast %cst_92 : f32 to vector<16x1xf32>
      %228 = arith.divf %226, %227 : vector<16x1xf32>
      %229 = vector.broadcast %221 : vector<16x1xf32> to vector<16x32xf32>
      %230 = arith.subf %208, %229 : vector<16x32xf32>
      %cst_93 = arith.constant 9.99999996E-13 : f32
      %231 = vector.broadcast %cst_93 : f32 to vector<16x1xf32>
      %232 = arith.addf %228, %231 : vector<16x1xf32>
      %233 = math.rsqrt %232 : vector<16x1xf32>
      %234 = vector.broadcast %233 : vector<16x1xf32> to vector<16x32xf32>
      %235 = arith.mulf %230, %234 : vector<16x32xf32>
      %236 = vector.broadcast %216 : vector<1x32xf32> to vector<16x32xf32>
      %237 = arith.mulf %235, %236 : vector<16x32xf32>
      %238 = vector.broadcast %217 : vector<1x32xf32> to vector<16x32xf32>
      %239 = arith.addf %237, %238 : vector<16x32xf32>
      %c0_94 = arith.constant 0 : index
      %c0_95 = arith.constant 0 : index
      %240 = vector.load %arg17[%c0_94, %c0_95] : memref<16x32xf32, #tpu.memory_space<vmem>>, vector<16x32xf32>
      tpu.vector_store %arg17[%c0_94, %c0_95], %239 {strides = array<i32>} : memref<16x32xf32, #tpu.memory_space<vmem>>, vector<16x32xf32>,
    } else {
    }
    return
  }
  func.func @transform_0(%arg0: i32) -> (i32, i32) {
    %c0_i32 = arith.constant 0 : i32
    %c0_i32_0 = arith.constant 0 : i32
    %c0_i32_1 = arith.constant 0 : i32
    return %c0_i32, %c0_i32_0 : i32, i32
  }
  func.func @transform_1(%arg0: i32) -> (i32, i32, i32) {
    %c0_i32 = arith.constant 0 : i32
    %c0_i32_0 = arith.constant 0 : i32
    %c0_i32_1 = arith.constant 0 : i32
    return %arg0, %c0_i32, %c0_i32_0 : i32, i32, i32
  }
  func.func @transform_2(%arg0: i32) -> (i32, i32, i32) {
    %c0_i32 = arith.constant 0 : i32
    %c0_i32_0 = arith.constant 0 : i32
    %c0_i32_1 = arith.constant 0 : i32
    return %arg0, %c0_i32, %c0_i32_0 : i32, i32, i32
  }
  func.func @transform_3(%arg0: i32) -> (i32, i32, i32) {
    %c0_i32 = arith.constant 0 : i32
    %c0_i32_0 = arith.constant 0 : i32
    %c0_i32_1 = arith.constant 0 : i32
    return %arg0, %c0_i32, %c0_i32_0 : i32, i32, i32
  }
  func.func @transform_4(%arg0: i32) -> (i32, i32, i32) {
    %c0_i32 = arith.constant 0 : i32
    %c0_i32_0 = arith.constant 0 : i32
    %c0_i32_1 = arith.constant 0 : i32
    return %arg0, %c0_i32, %c0_i32_0 : i32, i32, i32
  }
  func.func @transform_5(%arg0: i32) -> (i32, i32, i32) {
    %c0_i32 = arith.constant 0 : i32
    %c0_i32_0 = arith.constant 0 : i32
    %c0_i32_1 = arith.constant 0 : i32
    return %arg0, %c0_i32, %c0_i32_0 : i32, i32, i32
  }
  func.func @transform_6(%arg0: i32) -> (i32, i32, i32) {
    %c0_i32 = arith.constant 0 : i32
    %c0_i32_0 = arith.constant 0 : i32
    %c0_i32_1 = arith.constant 0 : i32
    return %arg0, %c0_i32, %c0_i32_0 : i32, i32, i32
  }
  func.func @transform_7(%arg0: i32) -> (i32, i32, i32) {
    %c0_i32 = arith.constant 0 : i32
    %c0_i32_0 = arith.constant 0 : i32
    %c0_i32_1 = arith.constant 0 : i32
    return %arg0, %c0_i32, %c0_i32_0 : i32, i32, i32
  }
  func.func @transform_8(%arg0: i32) -> (i32, i32, i32) {
    %c0_i32 = arith.constant 0 : i32
    %c0_i32_0 = arith.constant 0 : i32
    %c0_i32_1 = arith.constant 0 : i32
    return %arg0, %c0_i32, %c0_i32_0 : i32, i32, i32
  }
  func.func @transform_9(%arg0: i32) -> (i32, i32, i32) {
    %c0_i32 = arith.constant 0 : i32
    %c0_i32_0 = arith.constant 0 : i32
    %c0_i32_1 = arith.constant 0 : i32
    return %arg0, %c0_i32, %c0_i32_0 : i32, i32, i32
  }
  func.func @transform_10(%arg0: i32) -> (i32, i32, i32) {
    %c0_i32 = arith.constant 0 : i32
    %c0_i32_0 = arith.constant 0 : i32
    %c0_i32_1 = arith.constant 0 : i32
    return %arg0, %c0_i32, %c0_i32_0 : i32, i32, i32
  }
  func.func @transform_11(%arg0: i32) -> (i32, i32, i32) {
    %c0_i32 = arith.constant 0 : i32
    %c0_i32_0 = arith.constant 0 : i32
    %c0_i32_1 = arith.constant 0 : i32
    return %arg0, %c0_i32, %c0_i32_0 : i32, i32, i32
  }
  func.func @transform_12(%arg0: i32) -> (i32, i32, i32) {
    %c0_i32 = arith.constant 0 : i32
    %c0_i32_0 = arith.constant 0 : i32
    %c0_i32_1 = arith.constant 0 : i32
    return %arg0, %c0_i32, %c0_i32_0 : i32, i32, i32
  }
  func.func @transform_13(%arg0: i32) -> (i32, i32) {
    %c0_i32 = arith.constant 0 : i32
    %c0_i32_0 = arith.constant 0 : i32
    %c0_i32_1 = arith.constant 0 : i32
    return %c0_i32, %c0_i32_0 : i32, i32
  }
  func.func @transform_14(%arg0: i32) -> (i32, i32) {
    %c0_i32 = arith.constant 0 : i32
    %c0_i32_0 = arith.constant 0 : i32
    %c0_i32_1 = arith.constant 0 : i32
    return %c0_i32, %c0_i32_0 : i32, i32
  }
  func.func @transform_15(%arg0: i32) -> (i32, i32, i32) {
    %c0_i32 = arith.constant 0 : i32
    %c0_i32_0 = arith.constant 0 : i32
    %c0_i32_1 = arith.constant 0 : i32
    return %arg0, %c0_i32, %c0_i32_0 : i32, i32, i32
  }
  func.func @transform_16(%arg0: i32) -> (i32, i32) {
    %c0_i32 = arith.constant 0 : i32
    %c0_i32_0 = arith.constant 0 : i32
    %c0_i32_1 = arith.constant 0 : i32
    return %c0_i32, %c0_i32_0 : i32, i32
  }
}

</mosaic_0001>

<llo_original>
// kernel: vit1_forward.2
$region0: #{vit1_forward.2}
  #allocation0 [shape = 'u32[]', space=smem, size = 0x4, offset = 0x4, fixed_abs, tag = 'smem constant byte address 0x4 - core index']
  #allocation1 [shape = 'u32[144,128]{1,0:T(1,128)}', space=vmem, size = 0x12000, scoped, tag = 'internal scratch']
  %s0 = inlined_call_operand.vmem [shape: f32[8,192], index: 0, kind: input, shape index: {}]
  %s1 = inlined_call_operand.vmem [shape: f32[192,32], index: 1, kind: input, shape index: {}]
  %s2 = inlined_call_operand.vmem [shape: f32[1,32], index: 2, kind: input, shape index: {}]
  %s3 = inlined_call_operand.vmem [shape: f32[8,32], index: 3, kind: output, shape index: {}]
  %s4 = sld [smem:[#allocation0]]
  $region22: #{vit1_forward.2} parent=0
    _
  %s6 = ssub.s32 1, %s4
  %s7 = scalar_select 0, %s6, %s4
  // Predicated region
  $region2: #{vit1_forward.2} parent=0 // pred_check
    _
  $region3: #{vit1_forward.2} parent=0 // pred_check_branch
    %9 = sbr.rel (0) target = $region5
  $region4: #{vit1_forward.2} parent=0 // pred_region
    _
  $region5: #{vit1_forward.2} parent=0 // pred_fallthru
    _
  // Predicated region
  $region6: #{vit1_forward.2} parent=0 // pred_check
    _
  $region7: #{vit1_forward.2} parent=0 // pred_check_branch
    %11 = sbr.rel (0) target = $region9
  $region8: #{vit1_forward.2} parent=0 // pred_region
    _
  $region9: #{vit1_forward.2} parent=0 // pred_fallthru
    _
  // Predicated region
  $region10: #{vit1_forward.2} parent=0 // pred_check
    _
  $region11: #{vit1_forward.2} parent=0 // pred_check_branch
    %13 = sbr.rel (0) target = $region13
  $region12: #{vit1_forward.2} parent=0 // pred_region
    _
  $region13: #{vit1_forward.2} parent=0 // pred_fallthru
    _
  %v14 = vld [vmem:[%s0] sm:$0xff]
  %v15 = vld [vmem:[%s0 + $0x8] sm:$0xff]
  %v16 = vld [vmem:[%s1] sm:$0xff]
  %v17 = vld [vmem:[%s1 + $0x8] sm:$0xff]
  %v18 = vld [vmem:[%s1 + $0x10] sm:$0xff]
  %v19 = vld [vmem:[%s1 + $0x18] sm:$0xff]
  %v20 = vld [vmem:[%s1 + $0x20] sm:$0xff]
  %v21 = vld [vmem:[%s1 + $0x28] sm:$0xff]
  %v22 = vld [vmem:[%s1 + $0x30] sm:$0xff]
  %v23 = vld [vmem:[%s1 + $0x38] sm:$0xff]
  %v24 = vld [vmem:[%s1 + $0x40] sm:$0xff]
  %v25 = vld [vmem:[%s1 + $0x48] sm:$0xff]
  %v26 = vld [vmem:[%s1 + $0x50] sm:$0xff]
  %v27 = vld [vmem:[%s1 + $0x58] sm:$0xff]
  %v28 = vld [vmem:[%s1 + $0x60] sm:$0xff]
  %v29 = vld [vmem:[%s1 + $0x68] sm:$0xff]
  %v30 = vld [vmem:[%s1 + $0x70] sm:$0xff]
  %v31 = vld [vmem:[%s1 + $0x78] sm:$0xff]
  %v32 = vld [vmem:[%s1 + $0x80] sm:$0xff]
  %v33 = vld [vmem:[%s1 + $0x88] sm:$0xff]
  %v34 = vld [vmem:[%s1 + $0x90] sm:$0xff]
  %v35 = vld [vmem:[%s1 + $0x98] sm:$0xff]
  %v36 = vld [vmem:[%s1 + $0xa0] sm:$0xff]
  %v37 = vld [vmem:[%s1 + $0xa8] sm:$0xff]
  %v38 = vld [vmem:[%s1 + $0xb0] sm:$0xff]
  %v39 = vld [vmem:[%s1 + $0xb8] sm:$0xff]
  %v40 = vld [vmem:[%s2] sm:$0x1]
  %v42 = vlaneseq
  %v43 = vshrl.u32 %v42, 7
  %v44 = vsub.s32 0, %v43
  %v45 = vrot.slane %v40, %v44
  %vm47 = vcmask 523264
  %v49 = vsel %vm47, %v15, 0
  %51 = vmatprep.subr.mxu0 0.0
  %52 = vmatpush1.msra.mxu0 %v16
  %53 = vmatprep.subr.mxu0 0.0
  %54 = vmatpush1.msra.mxu0 %v17
  %55 = vmatprep.subr.mxu0 0.0
  %56 = vmatpush1.msra.mxu0 %v18
  %57 = vmatprep.subr.mxu0 0.0
  %58 = vmatpush1.msra.mxu0 %v19
  %59 = vmatprep.subr.mxu0 0.0
  %60 = vmatpush1.msra.mxu0 %v20
  %61 = vmatprep.subr.mxu0 0.0
  %62 = vmatpush1.msra.mxu0 %v21
  %63 = vmatprep.subr.mxu0 0.0
  %64 = vmatpush1.msra.mxu0 %v22
  %65 = vmatprep.subr.mxu0 0.0
  %66 = vmatpush1.msra.mxu0 %v23
  %67 = vmatprep.subr.mxu0 0.0
  %68 = vmatpush1.msra.mxu0 %v24
  %69 = vmatprep.subr.mxu0 0.0
  %70 = vmatpush1.msra.mxu0 %v25
  %71 = vmatprep.subr.mxu0 0.0
  %72 = vmatpush1.msra.mxu0 %v26
  %73 = vmatprep.subr.mxu0 0.0
  %74 = vmatpush1.msra.mxu0 %v27
  %75 = vmatprep.subr.mxu0 0.0
  %76 = vmatpush1.msra.mxu0 %v28
  %77 = vmatprep.subr.mxu0 0.0
  %78 = vmatpush1.msra.mxu0 %v29
  %79 = vmatprep.subr.mxu0 0.0
  %80 = vmatpush1.msra.mxu0 %v30
  %81 = vmatprep.subr.mxu0 0.0
  %82 = vmatpush1.msra.mxu0 %v31
  %83 = vmatprep.subr.mxu0 0.0
  %84 = vmatpush1.msra.mxu0 %v32
  %85 = vmatprep.subr.mxu0 0.0
  %86 = vmatpush1.msra.mxu0 %v33
  %87 = vmatprep.subr.mxu0 0.0
  %88 = vmatpush1.msra.mxu0 %v34
  %89 = vmatprep.subr.mxu0 0.0
  %90 = vmatpush1.msra.mxu0 %v35
  %91 = vmatprep.subr.mxu0 0.0
  %92 = vmatpush1.msra.mxu0 %v36
  %93 = vmatprep.subr.mxu0 0.0
  %94 = vmatpush1.msra.mxu0 %v37
  %95 = vmatprep.subr.mxu0 0.0
  %96 = vmatpush1.msra.mxu0 %v38
  %97 = vmatprep.subr.mxu0 0.0
  %98 = vmatpush1.msra.mxu0 %v39
  %99 = vmatprep.subr.mxu0 0.0
  %100 = vmatpush1.msra.mxu0 0.0
  %101 = vmatprep.subr.mxu0 0.0
  %102 = vmatpush1.msra.mxu0 0.0
  %103 = vmatprep.subr.mxu0 0.0
  %104 = vmatpush1.msra.mxu0 0.0
  %105 = vmatprep.subr.mxu0 0.0
  %106 = vmatpush1.msra.mxu0 0.0
  %107 = vmatprep.subr.mxu0 0.0
  %108 = vmatpush1.msra.mxu0 0.0
  %109 = vmatprep.subr.mxu0 0.0
  %110 = vmatpush1.msra.mxu0 0.0
  %111 = vmatprep.subr.mxu0 0.0
  %112 = vmatpush1.msra.mxu0 0.0
  %113 = vmatprep.subr.mxu0 0.0
  %114 = vmatpush1.msra.mxu0 0.0
  %115 = vmatprep.mubr.f32.mxu0 %v49
  %116 = vmatmul.mubr.f32.gmra.mrb[0].mxu0 %v14
  %v117 = vpop.f32.mrb[0].mxu0
  %v118 = vadd.f32 %v45, %v117
  %v119 = vpop.f32.mrb[0].mxu0
  %120 = vdwg.mxu0
  %vm121 = vcmask 261120
  %122 = vst.msk [vmem:[%s3] sm:$0xff] %vm121, %v118
  // Predicated region
  $region14: #{vit1_forward.2} parent=0 // pred_check
    _
  $region15: #{vit1_forward.2} parent=0 // pred_check_branch
    %124 = sbr.rel (0) target = $region17
  $region16: #{vit1_forward.2} parent=0 // pred_region
    _
  $region17: #{vit1_forward.2} parent=0 // pred_fallthru
    _
  // Predicated region
  $region18: #{vit1_forward.2} parent=0 // pred_check
    _
  $region19: #{vit1_forward.2} parent=0 // pred_check_branch
    %126 = sbr.rel (0) target = $region21
  $region20: #{vit1_forward.2} parent=0 // pred_region
    _
  $region21: #{vit1_forward.2} parent=0 // pred_fallthru
    _

// kernel: vit1_forward.3
$region0: #{vit1_forward.3}
  #allocation0 [shape = 'u32[]', space=smem, size = 0x4, offset = 0x4, fixed_abs, tag = 'smem constant byte address 0x4 - core index']
  #allocation1 [shape = 'u32[144,128]{1,0:T(1,128)}', space=vmem, size = 0x12000, scoped, tag = 'internal scratch']
  #allocation2 [shape = 'f32[16,32]{1,0:T(8,128)}', space=vmem, size = 0x2000, scoped, tag = 'scratch operand']
  #allocation3 [shape = 'f32[16,32]{1,0:T(8,128)}', space=vmem, size = 0x2000, scoped, tag = 'scratch operand']
  %s0 = inlined_call_operand.vmem [shape: f32[16,32], index: 0, kind: input, shape index: {}]
  %s1 = inlined_call_operand.vmem [shape: f32[2,1,32], index: 1, kind: input, shape index: {}]
  %s2 = inlined_call_operand.vmem [shape: f32[2,1,32], index: 2, kind: input, shape index: {}]
  %s3 = inlined_call_operand.vmem [shape: bf16[2,32,96], index: 3, kind: input, shape index: {}]
  %s4 = inlined_call_operand.vmem [shape: f32[2,1,96], index: 4, kind: input, shape index: {}]
  %s5 = inlined_call_operand.vmem [shape: bf16[2,32,32], index: 5, kind: input, shape index: {}]
  %s6 = inlined_call_operand.vmem [shape: f32[2,1,32], index: 6, kind: input, shape index: {}]
  %s7 = inlined_call_operand.vmem [shape: f32[2,1,32], index: 7, kind: input, shape index: {}]
  %s8 = inlined_call_operand.vmem [shape: f32[2,1,32], index: 8, kind: input, shape index: {}]
  %s9 = inlined_call_operand.vmem [shape: bf16[2,32,128], index: 9, kind: input, shape index: {}]
  %s10 = inlined_call_operand.vmem [shape: f32[2,1,128], index: 10, kind: input, shape index: {}]
  %s11 = inlined_call_operand.vmem [shape: bf16[2,128,32], index: 11, kind: input, shape index: {}]
  %s12 = inlined_call_operand.vmem [shape: f32[2,1,32], index: 12, kind: input, shape index: {}]
  %s13 = inlined_call_operand.vmem [shape: f32[1,32], index: 13, kind: input, shape index: {}]
  %s14 = inlined_call_operand.vmem [shape: f32[1,32], index: 14, kind: input, shape index: {}]
  %s15 = inlined_call_operand.vmem [shape: f32[2,16,32], index: 15, kind: output, shape index: {0}]
  %s16 = inlined_call_operand.vmem [shape: f32[16,32], index: 16, kind: output, shape index: {1}]
  %17 = xla_tuple %s15, %s16
  %s18 = sld [smem:[#allocation0]]
  $region109: #{vit1_forward.3} parent=0
    _
  %s20 = ssub.s32 1, %s18
  %s21 = scalar_select 0, %s20, %s18
  loop: start=0, step=1, limit=4
  $region2: #{vit1_forward.3} parent=0 // loop_pre_header
    _
  $region3: #{vit1_forward.3} parent=0 // loop_header
    %s23 = sphi 0, %s27
    %p24 = scmp.ge.s32.totalorder %s23, 4
    %s31 = sphi 0, %s31
    %s33 = sphi 0, %s31
    %s34 = sphi 0, %s33
    %s48 = sphi 0, %s34
    %s54 = sphi 0, %s56
    %s57 = sphi 0, %s54
    %s58 = sphi 0, %s57
    %s74 = sphi 0, %s58
    %s80 = sphi 0, %s82
    %s83 = sphi 0, %s80
    %s84 = sphi 0, %s83
    %s100 = sphi 0, %s84
    %s106 = sphi 0, %s108
    %s109 = sphi 0, %s106
    %s110 = sphi 0, %s109
    %s126 = sphi 0, %s110
    %s132 = sphi 0, %s134
    %s135 = sphi 0, %s132
    %s136 = sphi 0, %s135
    %s152 = sphi 0, %s136
    %s158 = sphi 0, %s160
    %s161 = sphi 0, %s158
    %s162 = sphi 0, %s161
    %s178 = sphi 0, %s162
    %s184 = sphi 0, %s186
    %s187 = sphi 0, %s184
    %s188 = sphi 0, %s187
    %s204 = sphi 0, %s188
    %s210 = sphi 0, %s212
    %s213 = sphi 0, %s210
    %s214 = sphi 0, %s213
    %s230 = sphi 0, %s214
    %s236 = sphi 0, %s238
    %s239 = sphi 0, %s236
    %s240 = sphi 0, %s239
    %s256 = sphi 0, %s240
    %s262 = sphi 0, %s264
    %s265 = sphi 0, %s262
    %s266 = sphi 0, %s265
    %s282 = sphi 0, %s266
    %s288 = sphi 0, %s290
    %s291 = sphi 0, %s288
    %s292 = sphi 0, %s291
    %s308 = sphi 0, %s292
    %s314 = sphi 0, %s316
    %s317 = sphi 0, %s314
    %s318 = sphi 0, %s317
    %s334 = sphi 0, %s318
    %s340 = sphi 0, %s342
    %s343 = sphi 0, %s340
    %s344 = sphi 0, %s343
    %s360 = sphi 0, %s344
    %s364 = sphi 0, %s364
    %s366 = sphi 0, %s364
    %s367 = sphi 0, %s366
    %s381 = sphi 0, %s367
    %s385 = sphi 0, %s385
    %s387 = sphi 0, %s385
    %s388 = sphi 0, %s387
    %s402 = sphi 0, %s388
    %s408 = sphi 0, %s410
    %s411 = sphi 0, %s408
    %s412 = sphi 0, %s411
    %s428 = sphi 0, %s412
    %s432 = sphi 0, %s432
    %s434 = sphi 0, %s432
    %s435 = sphi 0, %s434
    %s449 = sphi 0, %s435
  $region4: #{vit1_forward.3} parent=0 // loop_header_branch
    %26 = sbr.rel (%p24) target = $region8
  $region5: #{vit1_forward.3} parent=0 // loop_body
    %s28 = ssub.s32 %s23, 1
    %s29 = ssub.s32 %s23, 2
    %s30 = sadd.s32 %s23, 1
    %s32 = sadd.s32 %s31, 1
    %p35 = scmp.eq.s32.totalorder %s23, 1
    %p36 = scmp.ne.s32.totalorder %s31, %s33
    %p37 = scmp.eq.s32.totalorder %s23, 0
    %p38 = por %p36, %p37
    %p39 = scmp.ne.s32.totalorder %s31, %s33
    %p40 = scmp.eq.s32.totalorder %s28, 1
    %p41 = por %p39, %p40
    %p42 = scmp.ne.s32.totalorder %s33, %s34
    %p43 = scmp.eq.s32.totalorder %s28, 0
    %p44 = por %p42, %p43
    %p45 = scmp.ne.s32.totalorder %s33, %s34
    %p46 = scmp.eq.s32.totalorder %s29, 1
    %p47 = por %p45, %p46
    %p49 = scmp.ne.s32.totalorder %s34, %s48
    %p50 = scmp.eq.s32.totalorder %s29, 0
    %p51 = por %p49, %p50
    %s52 = ssub.s32 %s23, %s30
    %p53 = scmp.eq.s32.totalorder %s52, 0
    %s55 = sadd.s32 %s54, 1
    %s56 = scalar_select %p53, %s54, %s55
    %p59 = pneg %p53
    %p60 = scmp.eq.s32.totalorder %s23, 1
    %p61 = por %p59, %p60
    %p62 = scmp.ne.s32.totalorder %s54, %s57
    %p63 = scmp.eq.s32.totalorder %s23, 0
    %p64 = por %p62, %p63
    %p65 = scmp.ne.s32.totalorder %s54, %s57
    %p66 = scmp.eq.s32.totalorder %s28, 1
    %p67 = por %p65, %p66
    %p68 = scmp.ne.s32.totalorder %s57, %s58
    %p69 = scmp.eq.s32.totalorder %s28, 0
    %p70 = por %p68, %p69
    %p71 = scmp.ne.s32.totalorder %s57, %s58
    %p72 = scmp.eq.s32.totalorder %s29, 1
    %p73 = por %p71, %p72
    %p75 = scmp.ne.s32.totalorder %s58, %s74
    %p76 = scmp.eq.s32.totalorder %s29, 0
    %p77 = por %p75, %p76
    %s78 = ssub.s32 %s23, %s30
    %p79 = scmp.eq.s32.totalorder %s78, 0
    %s81 = sadd.s32 %s80, 1
    %s82 = scalar_select %p79, %s80, %s81
    %p85 = pneg %p79
    %p86 = scmp.eq.s32.totalorder %s23, 1
    %p87 = por %p85, %p86
    %p88 = scmp.ne.s32.totalorder %s80, %s83
    %p89 = scmp.eq.s32.totalorder %s23, 0
    %p90 = por %p88, %p89
    %p91 = scmp.ne.s32.totalorder %s80, %s83
    %p92 = scmp.eq.s32.totalorder %s28, 1
    %p93 = por %p91, %p92
    %p94 = scmp.ne.s32.totalorder %s83, %s84
    %p95 = scmp.eq.s32.totalorder %s28, 0
    %p96 = por %p94, %p95
    %p97 = scmp.ne.s32.totalorder %s83, %s84
    %p98 = scmp.eq.s32.totalorder %s29, 1
    %p99 = por %p97, %p98
    %p101 = scmp.ne.s32.totalorder %s84, %s100
    %p102 = scmp.eq.s32.totalorder %s29, 0
    %p103 = por %p101, %p102
    %s104 = ssub.s32 %s23, %s30
    %p105 = scmp.eq.s32.totalorder %s104, 0
    %s107 = sadd.s32 %s106, 1
    %s108 = scalar_select %p105, %s106, %s107
    %p111 = pneg %p105
    %p112 = scmp.eq.s32.totalorder %s23, 1
    %p113 = por %p111, %p112
    %p114 = scmp.ne.s32.totalorder %s106, %s109
    %p115 = scmp.eq.s32.totalorder %s23, 0
    %p116 = por %p114, %p115
    %p117 = scmp.ne.s32.totalorder %s106, %s109
    %p118 = scmp.eq.s32.totalorder %s28, 1
    %p119 = por %p117, %p118
    %p120 = scmp.ne.s32.totalorder %s109, %s110
    %p121 = scmp.eq.s32.totalorder %s28, 0
    %p122 = por %p120, %p121
    %p123 = scmp.ne.s32.totalorder %s109, %s110
    %p124 = scmp.eq.s32.totalorder %s29, 1
    %p125 = por %p123, %p124
    %p127 = scmp.ne.s32.totalorder %s110, %s126
    %p128 = scmp.eq.s32.totalorder %s29, 0
    %p129 = por %p127, %p128
    %s130 = ssub.s32 %s23, %s30
    %p131 = scmp.eq.s32.totalorder %s130, 0
    %s133 = sadd.s32 %s132, 1
    %s134 = scalar_select %p131, %s132, %s133
    %p137 = pneg %p131
    %p138 = scmp.eq.s32.totalorder %s23, 1
    %p139 = por %p137, %p138
    %p140 = scmp.ne.s32.totalorder %s132, %s135
    %p141 = scmp.eq.s32.totalorder %s23, 0
    %p142 = por %p140, %p141
    %p143 = scmp.ne.s32.totalorder %s132, %s135
    %p144 = scmp.eq.s32.totalorder %s28, 1
    %p145 = por %p143, %p144
    %p146 = scmp.ne.s32.totalorder %s135, %s136
    %p147 = scmp.eq.s32.totalorder %s28, 0
    %p148 = por %p146, %p147
    %p149 = scmp.ne.s32.totalorder %s135, %s136
    %p150 = scmp.eq.s32.totalorder %s29, 1
    %p151 = por %p149, %p150
    %p153 = scmp.ne.s32.totalorder %s136, %s152
    %p154 = scmp.eq.s32.totalorder %s29, 0
    %p155 = por %p153, %p154
    %s156 = ssub.s32 %s23, %s30
    %p157 = scmp.eq.s32.totalorder %s156, 0
    %s159 = sadd.s32 %s158, 1
    %s160 = scalar_select %p157, %s158, %s159
    %p163 = pneg %p157
    %p164 = scmp.eq.s32.totalorder %s23, 1
    %p165 = por %p163, %p164
    %p166 = scmp.ne.s32.totalorder %s158, %s161
    %p167 = scmp.eq.s32.totalorder %s23, 0
    %p168 = por %p166, %p167
    %p169 = scmp.ne.s32.totalorder %s158, %s161
    %p170 = scmp.eq.s32.totalorder %s28, 1
    %p171 = por %p169, %p170
    %p172 = scmp.ne.s32.totalorder %s161, %s162
    %p173 = scmp.eq.s32.totalorder %s28, 0
    %p174 = por %p172, %p173
    %p175 = scmp.ne.s32.totalorder %s161, %s162
    %p176 = scmp.eq.s32.totalorder %s29, 1
    %p177 = por %p175, %p176
    %p179 = scmp.ne.s32.totalorder %s162, %s178
    %p180 = scmp.eq.s32.totalorder %s29, 0
    %p181 = por %p179, %p180
    %s182 = ssub.s32 %s23, %s30
    %p183 = scmp.eq.s32.totalorder %s182, 0
    %s185 = sadd.s32 %s184, 1
    %s186 = scalar_select %p183, %s184, %s185
    %p189 = pneg %p183
    %p190 = scmp.eq.s32.totalorder %s23, 1
    %p191 = por %p189, %p190
    %p192 = scmp.ne.s32.totalorder %s184, %s187
    %p193 = scmp.eq.s32.totalorder %s23, 0
    %p194 = por %p192, %p193
    %p195 = scmp.ne.s32.totalorder %s184, %s187
    %p196 = scmp.eq.s32.totalorder %s28, 1
    %p197 = por %p195, %p196
    %p198 = scmp.ne.s32.totalorder %s187, %s188
    %p199 = scmp.eq.s32.totalorder %s28, 0
    %p200 = por %p198, %p199
    %p201 = scmp.ne.s32.totalorder %s187, %s188
    %p202 = scmp.eq.s32.totalorder %s29, 1
    %p203 = por %p201, %p202
    %p205 = scmp.ne.s32.totalorder %s188, %s204
    %p206 = scmp.eq.s32.totalorder %s29, 0
    %p207 = por %p205, %p206
    %s208 = ssub.s32 %s23, %s30
    %p209 = scmp.eq.s32.totalorder %s208, 0
    %s211 = sadd.s32 %s210, 1
    %s212 = scalar_select %p209, %s210, %s211
    %p215 = pneg %p209
    %p216 = scmp.eq.s32.totalorder %s23, 1
    %p217 = por %p215, %p216
    %p218 = scmp.ne.s32.totalorder %s210, %s213
    %p219 = scmp.eq.s32.totalorder %s23, 0
    %p220 = por %p218, %p219
    %p221 = scmp.ne.s32.totalorder %s210, %s213
    %p222 = scmp.eq.s32.totalorder %s28, 1
    %p223 = por %p221, %p222
    %p224 = scmp.ne.s32.totalorder %s213, %s214
    %p225 = scmp.eq.s32.totalorder %s28, 0
    %p226 = por %p224, %p225
    %p227 = scmp.ne.s32.totalorder %s213, %s214
    %p228 = scmp.eq.s32.totalorder %s29, 1
    %p229 = por %p227, %p228
    %p231 = scmp.ne.s32.totalorder %s214, %s230
    %p232 = scmp.eq.s32.totalorder %s29, 0
    %p233 = por %p231, %p232
    %s234 = ssub.s32 %s23, %s30
    %p235 = scmp.eq.s32.totalorder %s234, 0
    %s237 = sadd.s32 %s236, 1
    %s238 = scalar_select %p235, %s236, %s237
    %p241 = pneg %p235
    %p242 = scmp.eq.s32.totalorder %s23, 1
    %p243 = por %p241, %p242
    %p244 = scmp.ne.s32.totalorder %s236, %s239
    %p245 = scmp.eq.s32.totalorder %s23, 0
    %p246 = por %p244, %p245
    %p247 = scmp.ne.s32.totalorder %s236, %s239
    %p248 = scmp.eq.s32.totalorder %s28, 1
    %p249 = por %p247, %p248
    %p250 = scmp.ne.s32.totalorder %s239, %s240
    %p251 = scmp.eq.s32.totalorder %s28, 0
    %p252 = por %p250, %p251
    %p253 = scmp.ne.s32.totalorder %s239, %s240
    %p254 = scmp.eq.s32.totalorder %s29, 1
    %p255 = por %p253, %p254
    %p257 = scmp.ne.s32.totalorder %s240, %s256
    %p258 = scmp.eq.s32.totalorder %s29, 0
    %p259 = por %p257, %p258
    %s260 = ssub.s32 %s23, %s30
    %p261 = scmp.eq.s32.totalorder %s260, 0
    %s263 = sadd.s32 %s262, 1
    %s264 = scalar_select %p261, %s262, %s263
    %p267 = pneg %p261
    %p268 = scmp.eq.s32.totalorder %s23, 1
    %p269 = por %p267, %p268
    %p270 = scmp.ne.s32.totalorder %s262, %s265
    %p271 = scmp.eq.s32.totalorder %s23, 0
    %p272 = por %p270, %p271
    %p273 = scmp.ne.s32.totalorder %s262, %s265
    %p274 = scmp.eq.s32.totalorder %s28, 1
    %p275 = por %p273, %p274
    %p276 = scmp.ne.s32.totalorder %s265, %s266
    %p277 = scmp.eq.s32.totalorder %s28, 0
    %p278 = por %p276, %p277
    %p279 = scmp.ne.s32.totalorder %s265, %s266
    %p280 = scmp.eq.s32.totalorder %s29, 1
    %p281 = por %p279, %p280
    %p283 = scmp.ne.s32.totalorder %s266, %s282
    %p284 = scmp.eq.s32.totalorder %s29, 0
    %p285 = por %p283, %p284
    %s286 = ssub.s32 %s23, %s30
    %p287 = scmp.eq.s32.totalorder %s286, 0
    %s289 = sadd.s32 %s288, 1
    %s290 = scalar_select %p287, %s288, %s289
    %p293 = pneg %p287
    %p294 = scmp.eq.s32.totalorder %s23, 1
    %p295 = por %p293, %p294
    %p296 = scmp.ne.s32.totalorder %s288, %s291
    %p297 = scmp.eq.s32.totalorder %s23, 0
    %p298 = por %p296, %p297
    %p299 = scmp.ne.s32.totalorder %s288, %s291
    %p300 = scmp.eq.s32.totalorder %s28, 1
    %p301 = por %p299, %p300
    %p302 = scmp.ne.s32.totalorder %s291, %s292
    %p303 = scmp.eq.s32.totalorder %s28, 0
    %p304 = por %p302, %p303
    %p305 = scmp.ne.s32.totalorder %s291, %s292
    %p306 = scmp.eq.s32.totalorder %s29, 1
    %p307 = por %p305, %p306
    %p309 = scmp.ne.s32.totalorder %s292, %s308
    %p310 = scmp.eq.s32.totalorder %s29, 0
    %p311 = por %p309, %p310
    %s312 = ssub.s32 %s23, %s30
    %p313 = scmp.eq.s32.totalorder %s312, 0
    %s315 = sadd.s32 %s314, 1
    %s316 = scalar_select %p313, %s314, %s315
    %p319 = pneg %p313
    %p320 = scmp.eq.s32.totalorder %s23, 1
    %p321 = por %p319, %p320
    %p322 = scmp.ne.s32.totalorder %s314, %s317
    %p323 = scmp.eq.s32.totalorder %s23, 0
    %p324 = por %p322, %p323
    %p325 = scmp.ne.s32.totalorder %s314, %s317
    %p326 = scmp.eq.s32.totalorder %s28, 1
    %p327 = por %p325, %p326
    %p328 = scmp.ne.s32.totalorder %s317, %s318
    %p329 = scmp.eq.s32.totalorder %s28, 0
    %p330 = por %p328, %p329
    %p331 = scmp.ne.s32.totalorder %s317, %s318
    %p332 = scmp.eq.s32.totalorder %s29, 1
    %p333 = por %p331, %p332
    %p335 = scmp.ne.s32.totalorder %s318, %s334
    %p336 = scmp.eq.s32.totalorder %s29, 0
    %p337 = por %p335, %p336
    %s338 = ssub.s32 %s23, %s30
    %p339 = scmp.eq.s32.totalorder %s338, 0
    %s341 = sadd.s32 %s340, 1
    %s342 = scalar_select %p339, %s340, %s341
    %p345 = pneg %p339
    %p346 = scmp.eq.s32.totalorder %s23, 1
    %p347 = por %p345, %p346
    %p348 = scmp.ne.s32.totalorder %s340, %s343
    %p349 = scmp.eq.s32.totalorder %s23, 0
    %p350 = por %p348, %p349
    %p351 = scmp.ne.s32.totalorder %s340, %s343
    %p352 = scmp.eq.s32.totalorder %s28, 1
    %p353 = por %p351, %p352
    %p354 = scmp.ne.s32.totalorder %s343, %s344
    %p355 = scmp.eq.s32.totalorder %s28, 0
    %p356 = por %p354, %p355
    %p357 = scmp.ne.s32.totalorder %s343, %s344
    %p358 = scmp.eq.s32.totalorder %s29, 1
    %p359 = por %p357, %p358
    %p361 = scmp.ne.s32.totalorder %s344, %s360
    %p362 = scmp.eq.s32.totalorder %s29, 0
    %p363 = por %p361, %p362
    %s365 = sadd.s32 %s364, 1
    %p368 = scmp.eq.s32.totalorder %s23, 1
    %p369 = scmp.ne.s32.totalorder %s364, %s366
    %p370 = scmp.eq.s32.totalorder %s23, 0
    %p371 = por %p369, %p370
    %p372 = scmp.ne.s32.totalorder %s364, %s366
    %p373 = scmp.eq.s32.totalorder %s28, 1
    %p374 = por %p372, %p373
    %p375 = scmp.ne.s32.totalorder %s366, %s367
    %p376 = scmp.eq.s32.totalorder %s28, 0
    %p377 = por %p375, %p376
    %p378 = scmp.ne.s32.totalorder %s366, %s367
    %p379 = scmp.eq.s32.totalorder %s29, 1
    %p380 = por %p378, %p379
    %p382 = scmp.ne.s32.totalorder %s367, %s381
    %p383 = scmp.eq.s32.totalorder %s29, 0
    %p384 = por %p382, %p383
    %s386 = sadd.s32 %s385, 1
    %p389 = scmp.eq.s32.totalorder %s23, 1
    %p390 = scmp.ne.s32.totalorder %s385, %s387
    %p391 = scmp.eq.s32.totalorder %s23, 0
    %p392 = por %p390, %p391
    %p393 = scmp.ne.s32.totalorder %s385, %s387
    %p394 = scmp.eq.s32.totalorder %s28, 1
    %p395 = por %p393, %p394
    %p396 = scmp.ne.s32.totalorder %s387, %s388
    %p397 = scmp.eq.s32.totalorder %s28, 0
    %p398 = por %p396, %p397
    %p399 = scmp.ne.s32.totalorder %s387, %s388
    %p400 = scmp.eq.s32.totalorder %s29, 1
    %p401 = por %p399, %p400
    %p403 = scmp.ne.s32.totalorder %s388, %s402
    %p404 = scmp.eq.s32.totalorder %s29, 0
    %p405 = por %p403, %p404
    %s406 = ssub.s32 %s23, %s30
    %p407 = scmp.eq.s32.totalorder %s406, 0
    %s409 = sadd.s32 %s408, 1
    %s410 = scalar_select %p407, %s408, %s409
    %p413 = pneg %p407
    %p414 = scmp.eq.s32.totalorder %s23, 1
    %p415 = por %p413, %p414
    %p416 = scmp.ne.s32.totalorder %s408, %s411
    %p417 = scmp.eq.s32.totalorder %s23, 0
    %p418 = por %p416, %p417
    %p419 = scmp.ne.s32.totalorder %s408, %s411
    %p420 = scmp.eq.s32.totalorder %s28, 1
    %p421 = por %p419, %p420
    %p422 = scmp.ne.s32.totalorder %s411, %s412
    %p423 = scmp.eq.s32.totalorder %s28, 0
    %p424 = por %p422, %p423
    %p425 = scmp.ne.s32.totalorder %s411, %s412
    %p426 = scmp.eq.s32.totalorder %s29, 1
    %p427 = por %p425, %p426
    %p429 = scmp.ne.s32.totalorder %s412, %s428
    %p430 = scmp.eq.s32.totalorder %s29, 0
    %p431 = por %p429, %p430
    %s433 = sadd.s32 %s432, 1
    %p436 = scmp.eq.s32.totalorder %s23, 1
    %p437 = scmp.ne.s32.totalorder %s432, %s434
    %p438 = scmp.eq.s32.totalorder %s23, 0
    %p439 = por %p437, %p438
    %p440 = scmp.ne.s32.totalorder %s432, %s434
    %p441 = scmp.eq.s32.totalorder %s28, 1
    %p442 = por %p440, %p441
    %p443 = scmp.ne.s32.totalorder %s434, %s435
    %p444 = scmp.eq.s32.totalorder %s28, 0
    %p445 = por %p443, %p444
    %p446 = scmp.ne.s32.totalorder %s434, %s435
    %p447 = scmp.eq.s32.totalorder %s29, 1
    %p448 = por %p446, %p447
    %p450 = scmp.ne.s32.totalorder %s435, %s449
    %p451 = scmp.eq.s32.totalorder %s29, 0
    %p452 = por %p450, %p451
    %p453 = scmp.le.s32.totalorder 1, %s23
    %p454 = scmp.lt.s32.totalorder %s23, 3
    %p455 = pnand %p453, %p454
    %p456 = pneg %p455
    // Predicated region
    $region9: #{vit1_forward.3} parent=5 // pred_check
      _
    $region10: #{vit1_forward.3} parent=5 // pred_check_branch
      %458 = sbr.rel (%p455) target = $region12
    $region11: #{vit1_forward.3} parent=5 // pred_region
      %s459 = ssub.s32 %s23, 1
      // Predicated region
      $region13: #{vit1_forward.3} parent=11 // pred_check
        %p460 = pneg %p44
      $region14: #{vit1_forward.3} parent=11 // pred_check_branch
        %462 = sbr.rel (%p460) target = $region16
      $region15: #{vit1_forward.3} parent=11 // pred_region
        _
      $region16: #{vit1_forward.3} parent=11 // pred_fallthru
        _
      // Predicated region
      $region17: #{vit1_forward.3} parent=11 // pred_check
        %p463 = pneg %p377
      $region18: #{vit1_forward.3} parent=11 // pred_check_branch
        %465 = sbr.rel (%p463) target = $region20
      $region19: #{vit1_forward.3} parent=11 // pred_region
        _
      $region20: #{vit1_forward.3} parent=11 // pred_fallthru
        _
      // Predicated region
      $region21: #{vit1_forward.3} parent=11 // pred_check
        %p466 = pneg %p398
      $region22: #{vit1_forward.3} parent=11 // pred_check_branch
        %468 = sbr.rel (%p466) target = $region24
      $region23: #{vit1_forward.3} parent=11 // pred_region
        _
      $region24: #{vit1_forward.3} parent=11 // pred_fallthru
        _
    $region12: #{vit1_forward.3} parent=5 // pred_fallthru
      _
    %p469 = scmp.lt.s32.totalorder %s23, 2
    // Predicated region
    $region25: #{vit1_forward.3} parent=5 // pred_check
      %p470 = pneg %p469
    $region26: #{vit1_forward.3} parent=5 // pred_check_branch
      %472 = sbr.rel (%p470) target = $region28
    $region27: #{vit1_forward.3} parent=5 // pred_region
      // Predicated region
      $region29: #{vit1_forward.3} parent=27 // pred_check
        %p473 = pneg %p64
      $region30: #{vit1_forward.3} parent=27 // pred_check_branch
        %475 = sbr.rel (%p473) target = $region32
      $region31: #{vit1_forward.3} parent=27 // pred_region
        %p476 = scmp.lt.s32.totalorder %s23, 1
        %s477 = scalar_select %p476, %s23, 1
        %s478 = scalar_lea.vmem %s1, %s477
      $region32: #{vit1_forward.3} parent=27 // pred_fallthru
        _
      // Predicated region
      $region33: #{vit1_forward.3} parent=27 // pred_check
        %p479 = pneg %p90
      $region34: #{vit1_forward.3} parent=27 // pred_check_branch
        %481 = sbr.rel (%p479) target = $region36
      $region35: #{vit1_forward.3} parent=27 // pred_region
        %p482 = scmp.lt.s32.totalorder %s23, 1
        %s483 = scalar_select %p482, %s23, 1
        %s484 = scalar_lea.vmem %s2, %s483
      $region36: #{vit1_forward.3} parent=27 // pred_fallthru
        _
      // Predicated region
      $region37: #{vit1_forward.3} parent=27 // pred_check
        %p485 = pneg %p116
      $region38: #{vit1_forward.3} parent=27 // pred_check_branch
        %487 = sbr.rel (%p485) target = $region40
      $region39: #{vit1_forward.3} parent=27 // pred_region
        %p488 = scmp.lt.s32.totalorder %s23, 1
        %s489 = scalar_select %p488, %s23, 1
        %s490 = smul.addr %s489, 4
        %s491 = smul.addr %s490, 4
        %s492 = scalar_lea.vmem %s3, %s491
      $region40: #{vit1_forward.3} parent=27 // pred_fallthru
        _
      // Predicated region
      $region41: #{vit1_forward.3} parent=27 // pred_check
        %p493 = pneg %p142
      $region42: #{vit1_forward.3} parent=27 // pred_check_branch
        %495 = sbr.rel (%p493) target = $region44
      $region43: #{vit1_forward.3} parent=27 // pred_region
        %p496 = scmp.lt.s32.totalorder %s23, 1
        %s497 = scalar_select %p496, %s23, 1
        %s498 = scalar_lea.vmem %s4, %s497
      $region44: #{vit1_forward.3} parent=27 // pred_fallthru
        _
      // Predicated region
      $region45: #{vit1_forward.3} parent=27 // pred_check
        %p499 = pneg %p168
      $region46: #{vit1_forward.3} parent=27 // pred_check_branch
        %501 = sbr.rel (%p499) target = $region48
      $region47: #{vit1_forward.3} parent=27 // pred_region
        %p502 = scmp.lt.s32.totalorder %s23, 1
        %s503 = scalar_select %p502, %s23, 1
        %s504 = smul.addr %s503, 4
        %s505 = smul.addr %s504, 4
        %s506 = scalar_lea.vmem %s5, %s505
      $region48: #{vit1_forward.3} parent=27 // pred_fallthru
        _
      // Predicated region
      $region49: #{vit1_forward.3} parent=27 // pred_check
        %p507 = pneg %p194
      $region50: #{vit1_forward.3} parent=27 // pred_check_branch
        %509 = sbr.rel (%p507) target = $region52
      $region51: #{vit1_forward.3} parent=27 // pred_region
        %p510 = scmp.lt.s32.totalorder %s23, 1
        %s511 = scalar_select %p510, %s23, 1
        %s512 = scalar_lea.vmem %s6, %s511
      $region52: #{vit1_forward.3} parent=27 // pred_fallthru
        _
      // Predicated region
      $region53: #{vit1_forward.3} parent=27 // pred_check
        %p513 = pneg %p220
      $region54: #{vit1_forward.3} parent=27 // pred_check_branch
        %515 = sbr.rel (%p513) target = $region56
      $region55: #{vit1_forward.3} parent=27 // pred_region
        %p516 = scmp.lt.s32.totalorder %s23, 1
        %s517 = scalar_select %p516, %s23, 1
        %s518 = scalar_lea.vmem %s7, %s517
      $region56: #{vit1_forward.3} parent=27 // pred_fallthru
        _
      // Predicated region
      $region57: #{vit1_forward.3} parent=27 // pred_check
        %p519 = pneg %p246
      $region58: #{vit1_forward.3} parent=27 // pred_check_branch
        %521 = sbr.rel (%p519) target = $region60
      $region59: #{vit1_forward.3} parent=27 // pred_region
        %p522 = scmp.lt.s32.totalorder %s23, 1
        %s523 = scalar_select %p522, %s23, 1
        %s524 = scalar_lea.vmem %s8, %s523
      $region60: #{vit1_forward.3} parent=27 // pred_fallthru
        _
      // Predicated region
      $region61: #{vit1_forward.3} parent=27 // pred_check
        %p525 = pneg %p272
      $region62: #{vit1_forward.3} parent=27 // pred_check_branch
        %527 = sbr.rel (%p525) target = $region64
      $region63: #{vit1_forward.3} parent=27 // pred_region
        %p528 = scmp.lt.s32.totalorder %s23, 1
        %s529 = scalar_select %p528, %s23, 1
        %s530 = smul.addr %s529, 4
        %s531 = smul.addr %s530, 4
        %s532 = scalar_lea.vmem %s9, %s531
      $region64: #{vit1_forward.3} parent=27 // pred_fallthru
        _
      // Predicated region
      $region65: #{vit1_forward.3} parent=27 // pred_check
        %p533 = pneg %p298
      $region66: #{vit1_forward.3} parent=27 // pred_check_branch
        %535 = sbr.rel (%p533) target = $region68
      $region67: #{vit1_forward.3} parent=27 // pred_region
        %p536 = scmp.lt.s32.totalorder %s23, 1
        %s537 = scalar_select %p536, %s23, 1
        %s538 = scalar_lea.vmem %s10, %s537
      $region68: #{vit1_forward.3} parent=27 // pred_fallthru
        _
      // Predicated region
      $region69: #{vit1_forward.3} parent=27 // pred_check
        %p539 = pneg %p324
      $region70: #{vit1_forward.3} parent=27 // pred_check_branch
        %541 = sbr.rel (%p539) target = $region72
      $region71: #{vit1_forward.3} parent=27 // pred_region
        %p542 = scmp.lt.s32.totalorder %s23, 1
        %s543 = scalar_select %p542, %s23, 1
        %s544 = smul.addr %s543, 16
        %s545 = smul.addr %s544, 4
        %s546 = scalar_lea.vmem %s11, %s545
      $region72: #{vit1_forward.3} parent=27 // pred_fallthru
        _
      // Predicated region
      $region73: #{vit1_forward.3} parent=27 // pred_check
        %p547 = pneg %p350
      $region74: #{vit1_forward.3} parent=27 // pred_check_branch
        %549 = sbr.rel (%p547) target = $region76
      $region75: #{vit1_forward.3} parent=27 // pred_region
        %p550 = scmp.lt.s32.totalorder %s23, 1
        %s551 = scalar_select %p550, %s23, 1
        %s552 = scalar_lea.vmem %s12, %s551
      $region76: #{vit1_forward.3} parent=27 // pred_fallthru
        _
    $region28: #{vit1_forward.3} parent=5 // pred_fallthru
      _
    %p553 = scmp.le.s32.totalorder 1, %s23
    %p554 = scmp.lt.s32.totalorder %s23, 3
    %p555 = pnand %p553, %p554
    %p556 = pneg %p555
    // Predicated region
    $region77: #{vit1_forward.3} parent=5 // pred_check
      _
    $region78: #{vit1_forward.3} parent=5 // pred_check_branch
      %558 = sbr.rel (%p555) target = $region80
    $region79: #{vit1_forward.3} parent=5 // pred_region
      %s559 = ssub.s32 %s23, 1
      %p560 = pneg %p44
      %p561 = pneg %p41
      %p562 = scmp.lt.s32.totalorder %s28, 1
      %s563 = scalar_select %p562, %s28, 1
      %s564 = scalar_lea.vmem %s1, %s563
      %p565 = pneg %p70
      %p566 = pneg %p67
      %p567 = scmp.lt.s32.totalorder %s28, 1
      %s568 = scalar_select %p567, %s28, 1
      %s569 = scalar_lea.vmem %s2, %s568
      %p570 = pneg %p96
      %p571 = pneg %p93
      %p572 = scmp.lt.s32.totalorder %s28, 1
      %s573 = scalar_select %p572, %s28, 1
      %s574 = smul.addr %s573, 4
      %s575 = smul.addr %s574, 4
      %s576 = scalar_lea.vmem %s3, %s575
      %p577 = pneg %p122
      %p578 = pneg %p119
      %p579 = scmp.lt.s32.totalorder %s28, 1
      %s580 = scalar_select %p579, %s28, 1
      %s581 = scalar_lea.vmem %s4, %s580
      %p582 = pneg %p148
      %p583 = pneg %p145
      %p584 = scmp.lt.s32.totalorder %s28, 1
      %s585 = scalar_select %p584, %s28, 1
      %s586 = smul.addr %s585, 4
      %s587 = smul.addr %s586, 4
      %s588 = scalar_lea.vmem %s5, %s587
      %p589 = pneg %p174
      %p590 = pneg %p171
      %p591 = scmp.lt.s32.totalorder %s28, 1
      %s592 = scalar_select %p591, %s28, 1
      %s593 = scalar_lea.vmem %s6, %s592
      %p594 = pneg %p200
      %p595 = pneg %p197
      %p596 = scmp.lt.s32.totalorder %s28, 1
      %s597 = scalar_select %p596, %s28, 1
      %s598 = scalar_lea.vmem %s7, %s597
      %p599 = pneg %p226
      %p600 = pneg %p223
      %p601 = scmp.lt.s32.totalorder %s28, 1
      %s602 = scalar_select %p601, %s28, 1
      %s603 = scalar_lea.vmem %s8, %s602
      %p604 = pneg %p252
      %p605 = pneg %p249
      %p606 = scmp.lt.s32.totalorder %s28, 1
      %s607 = scalar_select %p606, %s28, 1
      %s608 = smul.addr %s607, 4
      %s609 = smul.addr %s608, 4
      %s610 = scalar_lea.vmem %s9, %s609
      %p611 = pneg %p278
      %p612 = pneg %p275
      %p613 = scmp.lt.s32.totalorder %s28, 1
      %s614 = scalar_select %p613, %s28, 1
      %s615 = scalar_lea.vmem %s10, %s614
      %p616 = pneg %p304
      %p617 = pneg %p301
      %p618 = scmp.lt.s32.totalorder %s28, 1
      %s619 = scalar_select %p618, %s28, 1
      %s620 = smul.addr %s619, 16
      %s621 = smul.addr %s620, 4
      %s622 = scalar_lea.vmem %s11, %s621
      %p623 = pneg %p330
      %p624 = pneg %p327
      %p625 = scmp.lt.s32.totalorder %s28, 1
      %s626 = scalar_select %p625, %s28, 1
      %s627 = scalar_lea.vmem %s12, %s626
      %p628 = pneg %p356
      %p629 = pneg %p353
      %p630 = pneg %p377
      %p631 = pneg %p374
      %p632 = pneg %p398
      %p633 = pneg %p395
      %p634 = pneg %p424
      %p635 = pneg %p421
      %p636 = scmp.lt.s32.totalorder %s28, 1
      %s637 = scalar_select %p636, %s28, 1
      %s638 = smul.addr %s637, 2
      %s639 = smul.addr %s638, 8
      %s640 = scalar_lea.vmem %s15, %s639
      %p641 = pneg %p445
      %p642 = pneg %p442
      %p643 = scmp.lt.s32.totalorder %s28, 1
      %s644 = scalar_select %p643, %s28, 1
      %s645 = scalar_lea.vmem %s1, %s644
      %p646 = scmp.lt.s32.totalorder %s28, 1
      %s647 = scalar_select %p646, %s28, 1
      %s648 = scalar_lea.vmem %s2, %s647
      %p649 = scmp.lt.s32.totalorder %s28, 1
      %s650 = scalar_select %p649, %s28, 1
      %s651 = smul.addr %s650, 4
      %s652 = smul.addr %s651, 4
      %s653 = scalar_lea.vmem %s3, %s652
      %p654 = scmp.lt.s32.totalorder %s28, 1
      %s655 = scalar_select %p654, %s28, 1
      %s656 = scalar_lea.vmem %s4, %s655
      %p657 = scmp.lt.s32.totalorder %s28, 1
      %s658 = scalar_select %p657, %s28, 1
      %s659 = smul.addr %s658, 4
      %s660 = smul.addr %s659, 4
      %s661 = scalar_lea.vmem %s5, %s660
      %p662 = scmp.lt.s32.totalorder %s28, 1
      %s663 = scalar_select %p662, %s28, 1
      %s664 = scalar_lea.vmem %s6, %s663
      %p665 = scmp.lt.s32.totalorder %s28, 1
      %s666 = scalar_select %p665, %s28, 1
      %s667 = scalar_lea.vmem %s7, %s666
      %p668 = scmp.lt.s32.totalorder %s28, 1
      %s669 = scalar_select %p668, %s28, 1
      %s670 = scalar_lea.vmem %s8, %s669
      %p671 = scmp.lt.s32.totalorder %s28, 1
      %s672 = scalar_select %p671, %s28, 1
      %s673 = smul.addr %s672, 4
      %s674 = smul.addr %s673, 4
      %s675 = scalar_lea.vmem %s9, %s674
      %p676 = scmp.lt.s32.totalorder %s28, 1
      %s677 = scalar_select %p676, %s28, 1
      %s678 = scalar_lea.vmem %s10, %s677
      %p679 = scmp.lt.s32.totalorder %s28, 1
      %s680 = scalar_select %p679, %s28, 1
      %s681 = smul.addr %s680, 16
      %s682 = smul.addr %s681, 4
      %s683 = scalar_lea.vmem %s11, %s682
      %p684 = scmp.lt.s32.totalorder %s28, 1
      %s685 = scalar_select %p684, %s28, 1
      %s686 = scalar_lea.vmem %s12, %s685
      %p687 = scmp.lt.s32.totalorder %s28, 1
      %s688 = scalar_select %p687, %s28, 1
      %s689 = smul.addr %s688, 2
      %s690 = smul.addr %s689, 8
      %s691 = scalar_lea.vmem %s15, %s690
      %p693 = scmp.eq.s32.totalorder %s28, 0
      // Predicated region
      $region81: #{vit1_forward.3} parent=79 // pred_check
        %p694 = pneg %p693
      $region82: #{vit1_forward.3} parent=79 // pred_check_branch
        %696 = sbr.rel (%p694) target = $region84
      $region83: #{vit1_forward.3} parent=79 // pred_region
        %v697 = vld [vmem:[%s0] sm:$0xff]
        %v698 = vld [vmem:[%s0 + $0x8] sm:$0xff]
        %vm699 = vcmask 261120
        %700 = vst.msk [vmem:[#allocation2] sm:$0xff] %vm699, %v697
        %701 = vst.msk [vmem:[#allocation2 + $0x8] sm:$0xff] %vm699, %v698
      $region84: #{vit1_forward.3} parent=79 // pred_fallthru
        _
      %v702 = vld [vmem:[#allocation2] sm:$0xff]
      %v703 = vld [vmem:[#allocation2 + $0x8] sm:$0xff]
      %v704 = vld [vmem:[%s645] sm:$0x1]
      %v705 = vld [vmem:[%s648] sm:$0x1]
      %vm706 = vcmask 261120
      %v707 = vsel %vm706, %v702, 0.0
      %708 = vadd.xlane.f32.xlu0 %v707
      %v709 = vpop.xlane.xlu0 %708
      %v710 = vsel %vm706, %v703, 0.0
      %711 = vadd.xlane.f32.xlu0 %v710
      %v712 = vpop.xlane.xlu0 %711
      %v713 = vrcp.pop 32.0
      %v714 = vmul.f32 %v709, %v713
      %v715 = vmul.f32 %v712, %v713
      %v716 = vsub.f32 %v702, %v714
      %v717 = vsub.f32 %v703, %v715
      %v718 = vmul.f32 %v716, %v716
      %v719 = vmul.f32 %v717, %v717
      %v720 = vsel %vm706, %v718, 0.0
      %721 = vadd.xlane.f32.xlu0 %v720
      %v722 = vpop.xlane.xlu0 %721
      %v723 = vsel %vm706, %v719, 0.0
      %724 = vadd.xlane.f32.xlu0 %v723
      %v725 = vpop.xlane.xlu0 %724
      %v726 = vmul.f32 %v722, %v713
      %v727 = vmul.f32 %v725, %v713
      %v728 = vadd.f32 %v726, 1e-12
      %v729 = vadd.f32 %v727, 1e-12
      %v730 = vrsqrt.pop %v728
      %v731 = vrsqrt.pop %v729
      %v732 = vmul.f32 %v716, %v730
      %v733 = vmul.f32 %v717, %v731
      %v735 = vlaneseq
      %v736 = vshrl.u32 %v735, 7
      %v737 = vsub.s32 0, %v736
      %v738 = vrot.slane %v704, %v737
      %v740 = vmul.f32 %v732, %v738
      %v741 = vmul.f32 %v733, %v738
      %v743 = vlaneseq
      %v744 = vshrl.u32 %v743, 7
      %v745 = vsub.s32 0, %v744
      %v746 = vrot.slane %v705, %v745
      %v748 = vadd.f32 %v740, %v746
      %v749 = vadd.f32 %v741, %v746
      %v750 = vpack.c.bf16 %v749, %v748
      %v751 = vld [vmem:[%s653] sm:$0xf]
      %v752 = vld [vmem:[%s653 + $0x4] sm:$0xf]
      %v753 = vld [vmem:[%s653 + $0x8] sm:$0xf]
      %v754 = vld [vmem:[%s653 + $0xc] sm:$0xf]
      %v755 = vld [vmem:[%s656] sm:$0x1]
      %v757 = vlaneseq
      %v758 = vshrl.u32 %v757, 7
      %v759 = vsub.s32 0, %v758
      %v760 = vrot.slane %v755, %v759
      %v766 = vunpack.c.l.b16 %v751
      %v767 = vunpack.c.l.b16 %v752
      %v768 = vunpack.c.l.b16 %v753
      %v769 = vunpack.c.l.b16 %v754
      %v770 = vpack.c.b16 %v767, %v766
      %v771 = vpack.c.b16 %v769, %v768
      %v775 = vsel %vm706, %v750, 0
      %777 = vmatprep.subr.bf16.mxu0 0
      %778 = vmatpush1.bf16.msra.mxu0 %v770
      %779 = vmatprep.subr.bf16.mxu0 0
      %780 = vmatpush1.bf16.msra.mxu0 %v771
      %781 = vmatprep.subr.bf16.mxu0 0
      %782 = vmatpush1.bf16.msra.mxu0 0
      %783 = vmatprep.subr.bf16.mxu0 0
      %784 = vmatpush1.bf16.msra.mxu0 0
      %785 = vmatprep.subr.bf16.mxu0 0
      %786 = vmatpush1.bf16.msra.mxu0 0
      %787 = vmatprep.subr.bf16.mxu0 0
      %788 = vmatpush1.bf16.msra.mxu0 0
      %789 = vmatprep.subr.bf16.mxu0 0
      %790 = vmatpush1.bf16.msra.mxu0 0
      %791 = vmatprep.subr.bf16.mxu0 0
      %792 = vmatpush1.bf16.msra.mxu0 0
      %793 = vmatprep.subr.bf16.mxu0 0
      %794 = vmatpush1.bf16.msra.mxu0 0
      %795 = vmatprep.subr.bf16.mxu0 0
      %796 = vmatpush1.bf16.msra.mxu0 0
      %797 = vmatprep.subr.bf16.mxu0 0
      %798 = vmatpush1.bf16.msra.mxu0 0
      %799 = vmatprep.subr.bf16.mxu0 0
      %800 = vmatpush1.bf16.msra.mxu0 0
      %801 = vmatprep.subr.bf16.mxu0 0
      %802 = vmatpush1.bf16.msra.mxu0 0
      %803 = vmatprep.subr.bf16.mxu0 0
      %804 = vmatpush1.bf16.msra.mxu0 0
      %805 = vmatprep.subr.bf16.mxu0 0
      %806 = vmatpush1.bf16.msra.mxu0 0
      %807 = vmatprep.subr.bf16.mxu0 0
      %808 = vmatpush1.bf16.msra.mxu0 0
      %809 = vmatprep.mubr.bf16.mxu0 0
      %810 = vmatmul.mubr.bf16.gmra.mrb[0].mxu0 %v775
      %v811 = vpop.f32.mrb[0].mxu0
      %v812 = vadd.f32 %v760, %v811
      %v813 = vpop.f32.mrb[0].mxu0
      %v814 = vpop.f32.mrb[0].mxu0
      %v815 = vadd.f32 %v760, %v814
      %v816 = vpop.f32.mrb[0].mxu0
      %817 = vdwg.mxu0
      %v818 = vlaneseq
      %v819 = vand.u32 %v818, 127
      %vm820 = vcmp.lt.s32.totalorder %v819, 5
      %v821 = vsel %vm820, 0.0, -1e+30
      %v822 = vpack.c.bf16 %v812, %v812
      %v823 = vpack.c.bf16 %v815, %v815
      %825 = vrot.lane.b32.xlu0 %v822, 96
      %v826 = vpop.permute.xlu0 %825
      %vm827 = vcmask 64512
      %v829 = vsel %vm827, %v822, 0
      %v832 = vsel %vm827, %v826, 0
      %834 = vmatprep.subr.bf16.mxu0 0
      %835 = vmatpush1.bf16.xpose.msra.mxu0 %v832
      %836 = vmatprep.subr.bf16.mxu0 0
      %837 = vmatpush1.bf16.xpose.msra.mxu0 0
      %838 = vmatprep.subr.bf16.mxu0 0
      %839 = vmatpush1.bf16.xpose.msra.mxu0 0
      %840 = vmatprep.subr.bf16.mxu0 0
      %841 = vmatpush1.bf16.xpose.msra.mxu0 0
      %842 = vmatprep.subr.bf16.mxu0 0
      %843 = vmatpush1.bf16.xpose.msra.mxu0 0
      %844 = vmatprep.subr.bf16.mxu0 0
      %845 = vmatpush1.bf16.xpose.msra.mxu0 0
      %846 = vmatprep.subr.bf16.mxu0 0
      %847 = vmatpush1.bf16.xpose.msra.mxu0 0
      %848 = vmatprep.subr.bf16.mxu0 0
      %849 = vmatpush1.bf16.xpose.msra.mxu0 0
      %850 = vmatprep.subr.bf16.mxu0 0
      %851 = vmatpush1.bf16.xpose.msra.mxu0 0
      %852 = vmatprep.subr.bf16.mxu0 0
      %853 = vmatpush1.bf16.xpose.msra.mxu0 0
      %854 = vmatprep.subr.bf16.mxu0 0
      %855 = vmatpush1.bf16.xpose.msra.mxu0 0
      %856 = vmatprep.subr.bf16.mxu0 0
      %857 = vmatpush1.bf16.xpose.msra.mxu0 0
      %858 = vmatprep.subr.bf16.mxu0 0
      %859 = vmatpush1.bf16.xpose.msra.mxu0 0
      %860 = vmatprep.subr.bf16.mxu0 0
      %861 = vmatpush1.bf16.xpose.msra.mxu0 0
      %862 = vmatprep.subr.bf16.mxu0 0
      %863 = vmatpush1.bf16.xpose.msra.mxu0 0
      %864 = vmatprep.subr.bf16.mxu0 0
      %865 = vmatpush1.bf16.xpose.msra.mxu0 0
      %866 = vmatprep.mubr.bf16.mxu0 0
      %867 = vmatmul.mubr.bf16.gmra.mrb[0].mxu0 %v829
      %v868 = vpop.f32.mrb[0].mxu0
      %v869 = vadd.f32 %v821, %v868
      %v870 = vpop.f32.mrb[0].mxu0
      %v871 = vpop.f32.mrb[0].mxu0
      %v872 = vpop.f32.mrb[0].mxu0
      %873 = vdwg.mxu0
      %875 = vrot.lane.b32.xlu0 %v823, 96
      %v876 = vpop.permute.xlu0 %875
      %v878 = vsel %vm827, %v823, 0
      %v881 = vsel %vm827, %v876, 0
      %883 = vmatprep.subr.bf16.mxu0 0
      %884 = vmatpush1.bf16.xpose.msra.mxu0 %v881
      %885 = vmatprep.subr.bf16.mxu0 0
      %886 = vmatpush1.bf16.xpose.msra.mxu0 0
      %887 = vmatprep.subr.bf16.mxu0 0
      %888 = vmatpush1.bf16.xpose.msra.mxu0 0
      %889 = vmatprep.subr.bf16.mxu0 0
      %890 = vmatpush1.bf16.xpose.msra.mxu0 0
      %891 = vmatprep.subr.bf16.mxu0 0
      %892 = vmatpush1.bf16.xpose.msra.mxu0 0
      %893 = vmatprep.subr.bf16.mxu0 0
      %894 = vmatpush1.bf16.xpose.msra.mxu0 0
      %895 = vmatprep.subr.bf16.mxu0 0
      %896 = vmatpush1.bf16.xpose.msra.mxu0 0
      %897 = vmatprep.subr.bf16.mxu0 0
      %898 = vmatpush1.bf16.xpose.msra.mxu0 0
      %899 = vmatprep.subr.bf16.mxu0 0
      %900 = vmatpush1.bf16.xpose.msra.mxu0 0
      %901 = vmatprep.subr.bf16.mxu0 0
      %902 = vmatpush1.bf16.xpose.msra.mxu0 0
      %903 = vmatprep.subr.bf16.mxu0 0
      %904 = vmatpush1.bf16.xpose.msra.mxu0 0
      %905 = vmatprep.subr.bf16.mxu0 0
      %906 = vmatpush1.bf16.xpose.msra.mxu0 0
      %907 = vmatprep.subr.bf16.mxu0 0
      %908 = vmatpush1.bf16.xpose.msra.mxu0 0
      %909 = vmatprep.subr.bf16.mxu0 0
      %910 = vmatpush1.bf16.xpose.msra.mxu0 0
      %911 = vmatprep.subr.bf16.mxu0 0
      %912 = vmatpush1.bf16.xpose.msra.mxu0 0
      %913 = vmatprep.subr.bf16.mxu0 0
      %914 = vmatpush1.bf16.xpose.msra.mxu0 0
      %915 = vmatprep.mubr.bf16.mxu0 0
      %916 = vmatmul.mubr.bf16.gmra.mrb[0].mxu0 %v878
      %v917 = vpop.f32.mrb[0].mxu0
      %v918 = vadd.f32 %v821, %v917
      %v919 = vpop.f32.mrb[0].mxu0
      %v920 = vpop.f32.mrb[0].mxu0
      %v921 = vpop.f32.mrb[0].mxu0
      %922 = vdwg.mxu0
      %v923 = vsel %vm827, %v869, -inf
      %924 = vmax.xlane.f32.xlu0 %v923
      %v925 = vpop.xlane.xlu0 %924
      %v926 = vsel %vm827, %v918, -inf
      %927 = vmax.xlane.f32.xlu0 %v926
      %v928 = vpop.xlane.xlu0 %927
      %v929 = vsub.f32 %v869, %v925
      %v930 = vsub.f32 %v918, %v928
      %v931 = vmul.f32 %v929, 1.442695
      %v932 = vpow.pop %v931
      %v933 = vmul.f32 %v930, 1.442695
      %v934 = vpow.pop %v933
      %v935 = vsel %vm827, %v932, 0.0
      %936 = vadd.xlane.f32.xlu0 %v935
      %v937 = vpop.xlane.xlu0 %936
      %v938 = vsel %vm827, %v934, 0.0
      %939 = vadd.xlane.f32.xlu0 %v938
      %v940 = vpop.xlane.xlu0 %939
      %v941 = vrcp.pop %v937
      %v942 = vrcp.pop %v940
      %v943 = vmul.f32 %v932, %v941
      %v944 = vmul.f32 %v934, %v942
      %v945 = vpack.c.bf16 %v943, %v943
      %v946 = vpack.c.bf16 %v944, %v944
      %947 = vrot.lane.b32.xlu0 %v822, 64
      %v948 = vpop.permute.xlu0 %947
      %v950 = vsel %vm827, %v945, 0
      %vm952 = vcmask 1043456
      %v954 = vsel %vm952, %v948, 0
      %956 = vmatprep.subr.bf16.mxu0 0
      %957 = vmatpush1.bf16.msra.mxu0 %v954
      %958 = vmatprep.subr.bf16.mxu0 0
      %959 = vmatpush1.bf16.msra.mxu0 0
      %960 = vmatprep.subr.bf16.mxu0 0
      %961 = vmatpush1.bf16.msra.mxu0 0
      %962 = vmatprep.subr.bf16.mxu0 0
      %963 = vmatpush1.bf16.msra.mxu0 0
      %964 = vmatprep.subr.bf16.mxu0 0
      %965 = vmatpush1.bf16.msra.mxu0 0
      %966 = vmatprep.subr.bf16.mxu0 0
      %967 = vmatpush1.bf16.msra.mxu0 0
      %968 = vmatprep.subr.bf16.mxu0 0
      %969 = vmatpush1.bf16.msra.mxu0 0
      %970 = vmatprep.subr.bf16.mxu0 0
      %971 = vmatpush1.bf16.msra.mxu0 0
      %972 = vmatprep.subr.bf16.mxu0 0
      %973 = vmatpush1.bf16.msra.mxu0 0
      %974 = vmatprep.subr.bf16.mxu0 0
      %975 = vmatpush1.bf16.msra.mxu0 0
      %976 = vmatprep.subr.bf16.mxu0 0
      %977 = vmatpush1.bf16.msra.mxu0 0
      %978 = vmatprep.subr.bf16.mxu0 0
      %979 = vmatpush1.bf16.msra.mxu0 0
      %980 = vmatprep.subr.bf16.mxu0 0
      %981 = vmatpush1.bf16.msra.mxu0 0
      %982 = vmatprep.subr.bf16.mxu0 0
      %983 = vmatpush1.bf16.msra.mxu0 0
      %984 = vmatprep.subr.bf16.mxu0 0
      %985 = vmatpush1.bf16.msra.mxu0 0
      %986 = vmatprep.subr.bf16.mxu0 0
      %987 = vmatpush1.bf16.msra.mxu0 0
      %988 = vmatprep.mubr.bf16.mxu0 0
      %989 = vmatmul.mubr.bf16.gmra.mrb[0].mxu0 %v950
      %v990 = vpop.f32.mrb[0].mxu0
      %v991 = vadd.f32 0.0, %v990
      %v992 = vpop.f32.mrb[0].mxu0
      %v993 = vpop.f32.mrb[0].mxu0
      %v994 = vpop.f32.mrb[0].mxu0
      %995 = vdwg.mxu0
      %996 = vrot.lane.b32.xlu0 %v823, 64
      %v997 = vpop.permute.xlu0 %996
      %v999 = vsel %vm827, %v946, 0
      %v1002 = vsel %vm952, %v997, 0
      %1004 = vmatprep.subr.bf16.mxu0 0
      %1005 = vmatpush1.bf16.msra.mxu0 %v1002
      %1006 = vmatprep.subr.bf16.mxu0 0
      %1007 = vmatpush1.bf16.msra.mxu0 0
      %1008 = vmatprep.subr.bf16.mxu0 0
      %1009 = vmatpush1.bf16.msra.mxu0 0
      %1010 = vmatprep.subr.bf16.mxu0 0
      %1011 = vmatpush1.bf16.msra.mxu0 0
      %1012 = vmatprep.subr.bf16.mxu0 0
      %1013 = vmatpush1.bf16.msra.mxu0 0
      %1014 = vmatprep.subr.bf16.mxu0 0
      %1015 = vmatpush1.bf16.msra.mxu0 0
      %1016 = vmatprep.subr.bf16.mxu0 0
      %1017 = vmatpush1.bf16.msra.mxu0 0
      %1018 = vmatprep.subr.bf16.mxu0 0
      %1019 = vmatpush1.bf16.msra.mxu0 0
      %1020 = vmatprep.subr.bf16.mxu0 0
      %1021 = vmatpush1.bf16.msra.mxu0 0
      %1022 = vmatprep.subr.bf16.mxu0 0
      %1023 = vmatpush1.bf16.msra.mxu0 0
      %1024 = vmatprep.subr.bf16.mxu0 0
      %1025 = vmatpush1.bf16.msra.mxu0 0
      %1026 = vmatprep.subr.bf16.mxu0 0
      %1027 = vmatpush1.bf16.msra.mxu0 0
      %1028 = vmatprep.subr.bf16.mxu0 0
      %1029 = vmatpush1.bf16.msra.mxu0 0
      %1030 = vmatprep.subr.bf16.mxu0 0
      %1031 = vmatpush1.bf16.msra.mxu0 0
      %1032 = vmatprep.subr.bf16.mxu0 0
      %1033 = vmatpush1.bf16.msra.mxu0 0
      %1034 = vmatprep.subr.bf16.mxu0 0
      %1035 = vmatpush1.bf16.msra.mxu0 0
      %1036 = vmatprep.mubr.bf16.mxu0 0
      %1037 = vmatmul.mubr.bf16.gmra.mrb[0].mxu0 %v999
      %v1038 = vpop.f32.mrb[0].mxu0
      %v1039 = vadd.f32 0.0, %v1038
      %v1040 = vpop.f32.mrb[0].mxu0
      %v1041 = vpop.f32.mrb[0].mxu0
      %v1042 = vpop.f32.mrb[0].mxu0
      %1043 = vdwg.mxu0
      %1044 = vst.msk [vmem:[#allocation3] sm:$0xff] %vm827, %v991
      %1045 = vst.msk [vmem:[#allocation3 + $0x8] sm:$0xff] %vm827, %v1039
      %1046 = vrot.lane.b32.xlu0 %v822, 120
      %v1047 = vpop.permute.xlu0 %1046
      %1048 = vrot.lane.b32.xlu0 %v822, 88
      %v1049 = vpop.permute.xlu0 %1048
      %v1051 = vsel %vm827, %v1047, 0
      %v1054 = vsel %vm827, %v1049, 0
      %1056 = vmatprep.subr.bf16.mxu0 0
      %1057 = vmatpush1.bf16.xpose.msra.mxu0 %v1054
      %1058 = vmatprep.subr.bf16.mxu0 0
      %1059 = vmatpush1.bf16.xpose.msra.mxu0 0
      %1060 = vmatprep.subr.bf16.mxu0 0
      %1061 = vmatpush1.bf16.xpose.msra.mxu0 0
      %1062 = vmatprep.subr.bf16.mxu0 0
      %1063 = vmatpush1.bf16.xpose.msra.mxu0 0
      %1064 = vmatprep.subr.bf16.mxu0 0
      %1065 = vmatpush1.bf16.xpose.msra.mxu0 0
      %1066 = vmatprep.subr.bf16.mxu0 0
      %1067 = vmatpush1.bf16.xpose.msra.mxu0 0
      %1068 = vmatprep.subr.bf16.mxu0 0
      %1069 = vmatpush1.bf16.xpose.msra.mxu0 0
      %1070 = vmatprep.subr.bf16.mxu0 0
      %1071 = vmatpush1.bf16.xpose.msra.mxu0 0
      %1072 = vmatprep.subr.bf16.mxu0 0
      %1073 = vmatpush1.bf16.xpose.msra.mxu0 0
      %1074 = vmatprep.subr.bf16.mxu0 0
      %1075 = vmatpush1.bf16.xpose.msra.mxu0 0
      %1076 = vmatprep.subr.bf16.mxu0 0
      %1077 = vmatpush1.bf16.xpose.msra.mxu0 0
      %1078 = vmatprep.subr.bf16.mxu0 0
      %1079 = vmatpush1.bf16.xpose.msra.mxu0 0
      %1080 = vmatprep.subr.bf16.mxu0 0
      %1081 = vmatpush1.bf16.xpose.msra.mxu0 0
      %1082 = vmatprep.subr.bf16.mxu0 0
      %1083 = vmatpush1.bf16.xpose.msra.mxu0 0
      %1084 = vmatprep.subr.bf16.mxu0 0
      %1085 = vmatpush1.bf16.xpose.msra.mxu0 0
      %1086 = vmatprep.subr.bf16.mxu0 0
      %1087 = vmatpush1.bf16.xpose.msra.mxu0 0
      %1088 = vmatprep.mubr.bf16.mxu0 0
      %1089 = vmatmul.mubr.bf16.gmra.mrb[0].mxu0 %v1051
      %v1090 = vpop.f32.mrb[0].mxu0
      %v1091 = vadd.f32 %v821, %v1090
      %v1092 = vpop.f32.mrb[0].mxu0
      %v1093 = vpop.f32.mrb[0].mxu0
      %v1094 = vpop.f32.mrb[0].mxu0
      %1095 = vdwg.mxu0
      %1096 = vrot.lane.b32.xlu0 %v823, 120
      %v1097 = vpop.permute.xlu0 %1096
      %1098 = vrot.lane.b32.xlu0 %v823, 88
      %v1099 = vpop.permute.xlu0 %1098
      %v1101 = vsel %vm827, %v1097, 0
      %v1104 = vsel %vm827, %v1099, 0
      %1106 = vmatprep.subr.bf16.mxu0 0
      %1107 = vmatpush1.bf16.xpose.msra.mxu0 %v1104
      %1108 = vmatprep.subr.bf16.mxu0 0
      %1109 = vmatpush1.bf16.xpose.msra.mxu0 0
      %1110 = vmatprep.subr.bf16.mxu0 0
      %1111 = vmatpush1.bf16.xpose.msra.mxu0 0
      %1112 = vmatprep.subr.bf16.mxu0 0
      %1113 = vmatpush1.bf16.xpose.msra.mxu0 0
      %1114 = vmatprep.subr.bf16.mxu0 0
      %1115 = vmatpush1.bf16.xpose.msra.mxu0 0
      %1116 = vmatprep.subr.bf16.mxu0 0
      %1117 = vmatpush1.bf16.xpose.msra.mxu0 0
      %1118 = vmatprep.subr.bf16.mxu0 0
      %1119 = vmatpush1.bf16.xpose.msra.mxu0 0
      %1120 = vmatprep.subr.bf16.mxu0 0
      %1121 = vmatpush1.bf16.xpose.msra.mxu0 0
      %1122 = vmatprep.subr.bf16.mxu0 0
      %1123 = vmatpush1.bf16.xpose.msra.mxu0 0
      %1124 = vmatprep.subr.bf16.mxu0 0
      %1125 = vmatpush1.bf16.xpose.msra.mxu0 0
      %1126 = vmatprep.subr.bf16.mxu0 0
      %1127 = vmatpush1.bf16.xpose.msra.mxu0 0
      %1128 = vmatprep.subr.bf16.mxu0 0
      %1129 = vmatpush1.bf16.xpose.msra.mxu0 0
      %1130 = vmatprep.subr.bf16.mxu0 0
      %1131 = vmatpush1.bf16.xpose.msra.mxu0 0
      %1132 = vmatprep.subr.bf16.mxu0 0
      %1133 = vmatpush1.bf16.xpose.msra.mxu0 0
      %1134 = vmatprep.subr.bf16.mxu0 0
      %1135 = vmatpush1.bf16.xpose.msra.mxu0 0
      %1136 = vmatprep.subr.bf16.mxu0 0
      %1137 = vmatpush1.bf16.xpose.msra.mxu0 0
      %1138 = vmatprep.mubr.bf16.mxu0 0
      %1139 = vmatmul.mubr.bf16.gmra.mrb[0].mxu0 %v1101
      %v1140 = vpop.f32.mrb[0].mxu0
      %v1141 = vadd.f32 %v821, %v1140
      %v1142 = vpop.f32.mrb[0].mxu0
      %v1143 = vpop.f32.mrb[0].mxu0
      %v1144 = vpop.f32.mrb[0].mxu0
      %1145 = vdwg.mxu0
      %v1146 = vsel %vm827, %v1091, -inf
      %1147 = vmax.xlane.f32.xlu0 %v1146
      %v1148 = vpop.xlane.xlu0 %1147
      %v1149 = vsel %vm827, %v1141, -inf
      %1150 = vmax.xlane.f32.xlu0 %v1149
      %v1151 = vpop.xlane.xlu0 %1150
      %v1152 = vsub.f32 %v1091, %v1148
      %v1153 = vsub.f32 %v1141, %v1151
      %v1154 = vmul.f32 %v1152, 1.442695
      %v1155 = vpow.pop %v1154
      %v1156 = vmul.f32 %v1153, 1.442695
      %v1157 = vpow.pop %v1156
      %v1158 = vsel %vm827, %v1155, 0.0
      %1159 = vadd.xlane.f32.xlu0 %v1158
      %v1160 = vpop.xlane.xlu0 %1159
      %v1161 = vsel %vm827, %v1157, 0.0
      %1162 = vadd.xlane.f32.xlu0 %v1161
      %v1163 = vpop.xlane.xlu0 %1162
      %v1164 = vrcp.pop %v1160
      %v1165 = vrcp.pop %v1163
      %v1166 = vmul.f32 %v1155, %v1164
      %v1167 = vmul.f32 %v1157, %v1165
      %v1168 = vpack.c.bf16 %v1166, %v1166
      %v1169 = vpack.c.bf16 %v1167, %v1167
      %1170 = vrot.lane.b32.xlu0 %v822, 56
      %v1171 = vpop.permute.xlu0 %1170
      %v1173 = vsel %vm827, %v1168, 0
      %v1176 = vsel %vm952, %v1171, 0
      %1178 = vmatprep.subr.bf16.mxu0 0
      %1179 = vmatpush1.bf16.msra.mxu0 %v1176
      %1180 = vmatprep.subr.bf16.mxu0 0
      %1181 = vmatpush1.bf16.msra.mxu0 0
      %1182 = vmatprep.subr.bf16.mxu0 0
      %1183 = vmatpush1.bf16.msra.mxu0 0
      %1184 = vmatprep.subr.bf16.mxu0 0
      %1185 = vmatpush1.bf16.msra.mxu0 0
      %1186 = vmatprep.subr.bf16.mxu0 0
      %1187 = vmatpush1.bf16.msra.mxu0 0
      %1188 = vmatprep.subr.bf16.mxu0 0
      %1189 = vmatpush1.bf16.msra.mxu0 0
      %1190 = vmatprep.subr.bf16.mxu0 0
      %1191 = vmatpush1.bf16.msra.mxu0 0
      %1192 = vmatprep.subr.bf16.mxu0 0
      %1193 = vmatpush1.bf16.msra.mxu0 0
      %1194 = vmatprep.subr.bf16.mxu0 0
      %1195 = vmatpush1.bf16.msra.mxu0 0
      %1196 = vmatprep.subr.bf16.mxu0 0
      %1197 = vmatpush1.bf16.msra.mxu0 0
      %1198 = vmatprep.subr.bf16.mxu0 0
      %1199 = vmatpush1.bf16.msra.mxu0 0
      %1200 = vmatprep.subr.bf16.mxu0 0
      %1201 = vmatpush1.bf16.msra.mxu0 0
      %1202 = vmatprep.subr.bf16.mxu0 0
      %1203 = vmatpush1.bf16.msra.mxu0 0
      %1204 = vmatprep.subr.bf16.mxu0 0
      %1205 = vmatpush1.bf16.msra.mxu0 0
      %1206 = vmatprep.subr.bf16.mxu0 0
      %1207 = vmatpush1.bf16.msra.mxu0 0
      %1208 = vmatprep.subr.bf16.mxu0 0
      %1209 = vmatpush1.bf16.msra.mxu0 0
      %1210 = vmatprep.mubr.bf16.mxu0 0
      %1211 = vmatmul.mubr.bf16.gmra.mrb[0].mxu0 %v1173
      %v1212 = vpop.f32.mrb[0].mxu0
      %v1213 = vadd.f32 0.0, %v1212
      %v1214 = vpop.f32.mrb[0].mxu0
      %v1215 = vpop.f32.mrb[0].mxu0
      %v1216 = vpop.f32.mrb[0].mxu0
      %1217 = vdwg.mxu0
      %1218 = vrot.lane.b32.xlu0 %v823, 56
      %v1219 = vpop.permute.xlu0 %1218
      %v1221 = vsel %vm827, %v1169, 0
      %v1224 = vsel %vm952, %v1219, 0
      %1226 = vmatprep.subr.bf16.mxu0 0
      %1227 = vmatpush1.bf16.msra.mxu0 %v1224
      %1228 = vmatprep.subr.bf16.mxu0 0
      %1229 = vmatpush1.bf16.msra.mxu0 0
      %1230 = vmatprep.subr.bf16.mxu0 0
      %1231 = vmatpush1.bf16.msra.mxu0 0
      %1232 = vmatprep.subr.bf16.mxu0 0
      %1233 = vmatpush1.bf16.msra.mxu0 0
      %1234 = vmatprep.subr.bf16.mxu0 0
      %1235 = vmatpush1.bf16.msra.mxu0 0
      %1236 = vmatprep.subr.bf16.mxu0 0
      %1237 = vmatpush1.bf16.msra.mxu0 0
      %1238 = vmatprep.subr.bf16.mxu0 0
      %1239 = vmatpush1.bf16.msra.mxu0 0
      %1240 = vmatprep.subr.bf16.mxu0 0
      %1241 = vmatpush1.bf16.msra.mxu0 0
      %1242 = vmatprep.subr.bf16.mxu0 0
      %1243 = vmatpush1.bf16.msra.mxu0 0
      %1244 = vmatprep.subr.bf16.mxu0 0
      %1245 = vmatpush1.bf16.msra.mxu0 0
      %1246 = vmatprep.subr.bf16.mxu0 0
      %1247 = vmatpush1.bf16.msra.mxu0 0
      %1248 = vmatprep.subr.bf16.mxu0 0
      %1249 = vmatpush1.bf16.msra.mxu0 0
      %1250 = vmatprep.subr.bf16.mxu0 0
      %1251 = vmatpush1.bf16.msra.mxu0 0
      %1252 = vmatprep.subr.bf16.mxu0 0
      %1253 = vmatpush1.bf16.msra.mxu0 0
      %1254 = vmatprep.subr.bf16.mxu0 0
      %1255 = vmatpush1.bf16.msra.mxu0 0
      %1256 = vmatprep.subr.bf16.mxu0 0
      %1257 = vmatpush1.bf16.msra.mxu0 0
      %1258 = vmatprep.mubr.bf16.mxu0 0
      %1259 = vmatmul.mubr.bf16.gmra.mrb[0].mxu0 %v1221
      %v1260 = vpop.f32.mrb[0].mxu0
      %v1261 = vadd.f32 0.0, %v1260
      %v1262 = vpop.f32.mrb[0].mxu0
      %v1263 = vpop.f32.mrb[0].mxu0
      %v1264 = vpop.f32.mrb[0].mxu0
      %1265 = vdwg.mxu0
      %1268 = vrot.lane.b32.xlu0 %v1213, 8
      %v1269 = vpop.permute.xlu0 %1268
      %1270 = vrot.lane.b32.xlu0 %v1261, 8
      %v1271 = vpop.permute.xlu0 %1270
      %vm1274 = vcmask 130112
      %1275 = vst.msk [vmem:[#allocation3] sm:$0xff] %vm1274, %v1269
      %1276 = vst.msk [vmem:[#allocation3 + $0x8] sm:$0xff] %vm1274, %v1271
      %1277 = vrot.lane.b32.xlu0 %v822, 112
      %v1278 = vpop.permute.xlu0 %1277
      %1279 = vrot.lane.b32.xlu0 %v822, 80
      %v1280 = vpop.permute.xlu0 %1279
      %v1282 = vsel %vm827, %v1278, 0
      %v1285 = vsel %vm827, %v1280, 0
      %1287 = vmatprep.subr.bf16.mxu0 0
      %1288 = vmatpush1.bf16.xpose.msra.mxu0 %v1285
      %1289 = vmatprep.subr.bf16.mxu0 0
      %1290 = vmatpush1.bf16.xpose.msra.mxu0 0
      %1291 = vmatprep.subr.bf16.mxu0 0
      %1292 = vmatpush1.bf16.xpose.msra.mxu0 0
      %1293 = vmatprep.subr.bf16.mxu0 0
      %1294 = vmatpush1.bf16.xpose.msra.mxu0 0
      %1295 = vmatprep.subr.bf16.mxu0 0
      %1296 = vmatpush1.bf16.xpose.msra.mxu0 0
      %1297 = vmatprep.subr.bf16.mxu0 0
      %1298 = vmatpush1.bf16.xpose.msra.mxu0 0
      %1299 = vmatprep.subr.bf16.mxu0 0
      %1300 = vmatpush1.bf16.xpose.msra.mxu0 0
      %1301 = vmatprep.subr.bf16.mxu0 0
      %1302 = vmatpush1.bf16.xpose.msra.mxu0 0
      %1303 = vmatprep.subr.bf16.mxu0 0
      %1304 = vmatpush1.bf16.xpose.msra.mxu0 0
      %1305 = vmatprep.subr.bf16.mxu0 0
      %1306 = vmatpush1.bf16.xpose.msra.mxu0 0
      %1307 = vmatprep.subr.bf16.mxu0 0
      %1308 = vmatpush1.bf16.xpose.msra.mxu0 0
      %1309 = vmatprep.subr.bf16.mxu0 0
      %1310 = vmatpush1.bf16.xpose.msra.mxu0 0
      %1311 = vmatprep.subr.bf16.mxu0 0
      %1312 = vmatpush1.bf16.xpose.msra.mxu0 0
      %1313 = vmatprep.subr.bf16.mxu0 0
      %1314 = vmatpush1.bf16.xpose.msra.mxu0 0
      %1315 = vmatprep.subr.bf16.mxu0 0
      %1316 = vmatpush1.bf16.xpose.msra.mxu0 0
      %1317 = vmatprep.subr.bf16.mxu0 0
      %1318 = vmatpush1.bf16.xpose.msra.mxu0 0
      %1319 = vmatprep.mubr.bf16.mxu0 0
      %1320 = vmatmul.mubr.bf16.gmra.mrb[0].mxu0 %v1282
      %v1321 = vpop.f32.mrb[0].mxu0
      %v1322 = vadd.f32 %v821, %v1321
      %v1323 = vpop.f32.mrb[0].mxu0
      %v1324 = vpop.f32.mrb[0].mxu0
      %v1325 = vpop.f32.mrb[0].mxu0
      %1326 = vdwg.mxu0
      %1327 = vrot.lane.b32.xlu0 %v823, 112
      %v1328 = vpop.permute.xlu0 %1327
      %1329 = vrot.lane.b32.xlu0 %v823, 80
      %v1330 = vpop.permute.xlu0 %1329
      %v1332 = vsel %vm827, %v1328, 0
      %v1335 = vsel %vm827, %v1330, 0
      %1337 = vmatprep.subr.bf16.mxu0 0
      %1338 = vmatpush1.bf16.xpose.msra.mxu0 %v1335
      %1339 = vmatprep.subr.bf16.mxu0 0
      %1340 = vmatpush1.bf16.xpose.msra.mxu0 0
      %1341 = vmatprep.subr.bf16.mxu0 0
      %1342 = vmatpush1.bf16.xpose.msra.mxu0 0
      %1343 = vmatprep.subr.bf16.mxu0 0
      %1344 = vmatpush1.bf16.xpose.msra.mxu0 0
      %1345 = vmatprep.subr.bf16.mxu0 0
      %1346 = vmatpush1.bf16.xpose.msra.mxu0 0
      %1347 = vmatprep.subr.bf16.mxu0 0
      %1348 = vmatpush1.bf16.xpose.msra.mxu0 0
      %1349 = vmatprep.subr.bf16.mxu0 0
      %1350 = vmatpush1.bf16.xpose.msra.mxu0 0
      %1351 = vmatprep.subr.bf16.mxu0 0
      %1352 = vmatpush1.bf16.xpose.msra.mxu0 0
      %1353 = vmatprep.subr.bf16.mxu0 0
      %1354 = vmatpush1.bf16.xpose.msra.mxu0 0
      %1355 = vmatprep.subr.bf16.mxu0 0
      %1356 = vmatpush1.bf16.xpose.msra.mxu0 0
      %1357 = vmatprep.subr.bf16.mxu0 0
      %1358 = vmatpush1.bf16.xpose.msra.mxu0 0
      %1359 = vmatprep.subr.bf16.mxu0 0
      %1360 = vmatpush1.bf16.xpose.msra.mxu0 0
      %1361 = vmatprep.subr.bf16.mxu0 0
      %1362 = vmatpush1.bf16.xpose.msra.mxu0 0
      %1363 = vmatprep.subr.bf16.mxu0 0
      %1364 = vmatpush1.bf16.xpose.msra.mxu0 0
      %1365 = vmatprep.subr.bf16.mxu0 0
      %1366 = vmatpush1.bf16.xpose.msra.mxu0 0
      %1367 = vmatprep.subr.bf16.mxu0 0
      %1368 = vmatpush1.bf16.xpose.msra.mxu0 0
      %1369 = vmatprep.mubr.bf16.mxu0 0
      %1370 = vmatmul.mubr.bf16.gmra.mrb[0].mxu0 %v1332
      %v1371 = vpop.f32.mrb[0].mxu0
      %v1372 = vadd.f32 %v821, %v1371
      %v1373 = vpop.f32.mrb[0].mxu0
      %v1374 = vpop.f32.mrb[0].mxu0
      %v1375 = vpop.f32.mrb[0].mxu0
      %1376 = vdwg.mxu0
      %v1377 = vsel %vm827, %v1322, -inf
      %1378 = vmax.xlane.f32.xlu0 %v1377
      %v1379 = vpop.xlane.xlu0 %1378
      %v1380 = vsel %vm827, %v1372, -inf
      %1381 = vmax.xlane.f32.xlu0 %v1380
      %v1382 = vpop.xlane.xlu0 %1381
      %v1383 = vsub.f32 %v1322, %v1379
      %v1384 = vsub.f32 %v1372, %v1382
      %v1385 = vmul.f32 %v1383, 1.442695
      %v1386 = vpow.pop %v1385
      %v1387 = vmul.f32 %v1384, 1.442695
      %v1388 = vpow.pop %v1387
      %v1389 = vsel %vm827, %v1386, 0.0
      %1390 = vadd.xlane.f32.xlu0 %v1389
      %v1391 = vpop.xlane.xlu0 %1390
      %v1392 = vsel %vm827, %v1388, 0.0
      %1393 = vadd.xlane.f32.xlu0 %v1392
      %v1394 = vpop.xlane.xlu0 %1393
      %v1395 = vrcp.pop %v1391
      %v1396 = vrcp.pop %v1394
      %v1397 = vmul.f32 %v1386, %v1395
      %v1398 = vmul.f32 %v1388, %v1396
      %v1399 = vpack.c.bf16 %v1397, %v1397
      %v1400 = vpack.c.bf16 %v1398, %v1398
      %1401 = vrot.lane.b32.xlu0 %v822, 48
      %v1402 = vpop.permute.xlu0 %1401
      %v1404 = vsel %vm827, %v1399, 0
      %v1407 = vsel %vm952, %v1402, 0
      %1409 = vmatprep.subr.bf16.mxu0 0
      %1410 = vmatpush1.bf16.msra.mxu0 %v1407
      %1411 = vmatprep.subr.bf16.mxu0 0
      %1412 = vmatpush1.bf16.msra.mxu0 0
      %1413 = vmatprep.subr.bf16.mxu0 0
      %1414 = vmatpush1.bf16.msra.mxu0 0
      %1415 = vmatprep.subr.bf16.mxu0 0
      %1416 = vmatpush1.bf16.msra.mxu0 0
      %1417 = vmatprep.subr.bf16.mxu0 0
      %1418 = vmatpush1.bf16.msra.mxu0 0
      %1419 = vmatprep.subr.bf16.mxu0 0
      %1420 = vmatpush1.bf16.msra.mxu0 0
      %1421 = vmatprep.subr.bf16.mxu0 0
      %1422 = vmatpush1.bf16.msra.mxu0 0
      %1423 = vmatprep.subr.bf16.mxu0 0
      %1424 = vmatpush1.bf16.msra.mxu0 0
      %1425 = vmatprep.subr.bf16.mxu0 0
      %1426 = vmatpush1.bf16.msra.mxu0 0
      %1427 = vmatprep.subr.bf16.mxu0 0
      %1428 = vmatpush1.bf16.msra.mxu0 0
      %1429 = vmatprep.subr.bf16.mxu0 0
      %1430 = vmatpush1.bf16.msra.mxu0 0
      %1431 = vmatprep.subr.bf16.mxu0 0
      %1432 = vmatpush1.bf16.msra.mxu0 0
      %1433 = vmatprep.subr.bf16.mxu0 0
      %1434 = vmatpush1.bf16.msra.mxu0 0
      %1435 = vmatprep.subr.bf16.mxu0 0
      %1436 = vmatpush1.bf16.msra.mxu0 0
      %1437 = vmatprep.subr.bf16.mxu0 0
      %1438 = vmatpush1.bf16.msra.mxu0 0
      %1439 = vmatprep.subr.bf16.mxu0 0
      %1440 = vmatpush1.bf16.msra.mxu0 0
      %1441 = vmatprep.mubr.bf16.mxu0 0
      %1442 = vmatmul.mubr.bf16.gmra.mrb[0].mxu0 %v1404
      %v1443 = vpop.f32.mrb[0].mxu0
      %v1444 = vadd.f32 0.0, %v1443
      %v1445 = vpop.f32.mrb[0].mxu0
      %v1446 = vpop.f32.mrb[0].mxu0
      %v1447 = vpop.f32.mrb[0].mxu0
      %1448 = vdwg.mxu0
      %1449 = vrot.lane.b32.xlu0 %v823, 48
      %v1450 = vpop.permute.xlu0 %1449
      %v1452 = vsel %vm827, %v1400, 0
      %v1455 = vsel %vm952, %v1450, 0
      %1457 = vmatprep.subr.bf16.mxu0 0
      %1458 = vmatpush1.bf16.msra.mxu0 %v1455
      %1459 = vmatprep.subr.bf16.mxu0 0
      %1460 = vmatpush1.bf16.msra.mxu0 0
      %1461 = vmatprep.subr.bf16.mxu0 0
      %1462 = vmatpush1.bf16.msra.mxu0 0
      %1463 = vmatprep.subr.bf16.mxu0 0
      %1464 = vmatpush1.bf16.msra.mxu0 0
      %1465 = vmatprep.subr.bf16.mxu0 0
      %1466 = vmatpush1.bf16.msra.mxu0 0
      %1467 = vmatprep.subr.bf16.mxu0 0
      %1468 = vmatpush1.bf16.msra.mxu0 0
      %1469 = vmatprep.subr.bf16.mxu0 0
      %1470 = vmatpush1.bf16.msra.mxu0 0
      %1471 = vmatprep.subr.bf16.mxu0 0
      %1472 = vmatpush1.bf16.msra.mxu0 0
      %1473 = vmatprep.subr.bf16.mxu0 0
      %1474 = vmatpush1.bf16.msra.mxu0 0
      %1475 = vmatprep.subr.bf16.mxu0 0
      %1476 = vmatpush1.bf16.msra.mxu0 0
      %1477 = vmatprep.subr.bf16.mxu0 0
      %1478 = vmatpush1.bf16.msra.mxu0 0
      %1479 = vmatprep.subr.bf16.mxu0 0
      %1480 = vmatpush1.bf16.msra.mxu0 0
      %1481 = vmatprep.subr.bf16.mxu0 0
      %1482 = vmatpush1.bf16.msra.mxu0 0
      %1483 = vmatprep.subr.bf16.mxu0 0
      %1484 = vmatpush1.bf16.msra.mxu0 0
      %1485 = vmatprep.subr.bf16.mxu0 0
      %1486 = vmatpush1.bf16.msra.mxu0 0
      %1487 = vmatprep.subr.bf16.mxu0 0
      %1488 = vmatpush1.bf16.msra.mxu0 0
      %1489 = vmatprep.mubr.bf16.mxu0 0
      %1490 = vmatmul.mubr.bf16.gmra.mrb[0].mxu0 %v1452
      %v1491 = vpop.f32.mrb[0].mxu0
      %v1492 = vadd.f32 0.0, %v1491
      %v1493 = vpop.f32.mrb[0].mxu0
      %v1494 = vpop.f32.mrb[0].mxu0
      %v1495 = vpop.f32.mrb[0].mxu0
      %1496 = vdwg.mxu0
      %1499 = vrot.lane.b32.xlu0 %v1444, 16
      %v1500 = vpop.permute.xlu0 %1499
      %1501 = vrot.lane.b32.xlu0 %v1492, 16
      %v1502 = vpop.permute.xlu0 %1501
      %vm1505 = vcmask 195712
      %1506 = vst.msk [vmem:[#allocation3] sm:$0xff] %vm1505, %v1500
      %1507 = vst.msk [vmem:[#allocation3 + $0x8] sm:$0xff] %vm1505, %v1502
      %1508 = vrot.lane.b32.xlu0 %v822, 104
      %v1509 = vpop.permute.xlu0 %1508
      %1510 = vrot.lane.b32.xlu0 %v822, 72
      %v1511 = vpop.permute.xlu0 %1510
      %v1513 = vsel %vm827, %v1509, 0
      %v1516 = vsel %vm827, %v1511, 0
      %1518 = vmatprep.subr.bf16.mxu0 0
      %1519 = vmatpush1.bf16.xpose.msra.mxu0 %v1516
      %1520 = vmatprep.subr.bf16.mxu0 0
      %1521 = vmatpush1.bf16.xpose.msra.mxu0 0
      %1522 = vmatprep.subr.bf16.mxu0 0
      %1523 = vmatpush1.bf16.xpose.msra.mxu0 0
      %1524 = vmatprep.subr.bf16.mxu0 0
      %1525 = vmatpush1.bf16.xpose.msra.mxu0 0
      %1526 = vmatprep.subr.bf16.mxu0 0
      %1527 = vmatpush1.bf16.xpose.msra.mxu0 0
      %1528 = vmatprep.subr.bf16.mxu0 0
      %1529 = vmatpush1.bf16.xpose.msra.mxu0 0
      %1530 = vmatprep.subr.bf16.mxu0 0
      %1531 = vmatpush1.bf16.xpose.msra.mxu0 0
      %1532 = vmatprep.subr.bf16.mxu0 0
      %1533 = vmatpush1.bf16.xpose.msra.mxu0 0
      %1534 = vmatprep.subr.bf16.mxu0 0
      %1535 = vmatpush1.bf16.xpose.msra.mxu0 0
      %1536 = vmatprep.subr.bf16.mxu0 0
      %1537 = vmatpush1.bf16.xpose.msra.mxu0 0
      %1538 = vmatprep.subr.bf16.mxu0 0
      %1539 = vmatpush1.bf16.xpose.msra.mxu0 0
      %1540 = vmatprep.subr.bf16.mxu0 0
      %1541 = vmatpush1.bf16.xpose.msra.mxu0 0
      %1542 = vmatprep.subr.bf16.mxu0 0
      %1543 = vmatpush1.bf16.xpose.msra.mxu0 0
      %1544 = vmatprep.subr.bf16.mxu0 0
      %1545 = vmatpush1.bf16.xpose.msra.mxu0 0
      %1546 = vmatprep.subr.bf16.mxu0 0
      %1547 = vmatpush1.bf16.xpose.msra.mxu0 0
      %1548 = vmatprep.subr.bf16.mxu0 0
      %1549 = vmatpush1.bf16.xpose.msra.mxu0 0
      %1550 = vmatprep.mubr.bf16.mxu0 0
      %1551 = vmatmul.mubr.bf16.gmra.mrb[0].mxu0 %v1513
      %v1552 = vpop.f32.mrb[0].mxu0
      %v1553 = vadd.f32 %v821, %v1552
      %v1554 = vpop.f32.mrb[0].mxu0
      %v1555 = vpop.f32.mrb[0].mxu0
      %v1556 = vpop.f32.mrb[0].mxu0
      %1557 = vdwg.mxu0
      %1558 = vrot.lane.b32.xlu0 %v823, 104
      %v1559 = vpop.permute.xlu0 %1558
      %1560 = vrot.lane.b32.xlu0 %v823, 72
      %v1561 = vpop.permute.xlu0 %1560
      %v1563 = vsel %vm827, %v1559, 0
      %v1566 = vsel %vm827, %v1561, 0
      %1568 = vmatprep.subr.bf16.mxu0 0
      %1569 = vmatpush1.bf16.xpose.msra.mxu0 %v1566
      %1570 = vmatprep.subr.bf16.mxu0 0
      %1571 = vmatpush1.bf16.xpose.msra.mxu0 0
      %1572 = vmatprep.subr.bf16.mxu0 0
      %1573 = vmatpush1.bf16.xpose.msra.mxu0 0
      %1574 = vmatprep.subr.bf16.mxu0 0
      %1575 = vmatpush1.bf16.xpose.msra.mxu0 0
      %1576 = vmatprep.subr.bf16.mxu0 0
      %1577 = vmatpush1.bf16.xpose.msra.mxu0 0
      %1578 = vmatprep.subr.bf16.mxu0 0
      %1579 = vmatpush1.bf16.xpose.msra.mxu0 0
      %1580 = vmatprep.subr.bf16.mxu0 0
      %1581 = vmatpush1.bf16.xpose.msra.mxu0 0
      %1582 = vmatprep.subr.bf16.mxu0 0
      %1583 = vmatpush1.bf16.xpose.msra.mxu0 0
      %1584 = vmatprep.subr.bf16.mxu0 0
      %1585 = vmatpush1.bf16.xpose.msra.mxu0 0
      %1586 = vmatprep.subr.bf16.mxu0 0
      %1587 = vmatpush1.bf16.xpose.msra.mxu0 0
      %1588 = vmatprep.subr.bf16.mxu0 0
      %1589 = vmatpush1.bf16.xpose.msra.mxu0 0
      %1590 = vmatprep.subr.bf16.mxu0 0
      %1591 = vmatpush1.bf16.xpose.msra.mxu0 0
      %1592 = vmatprep.subr.bf16.mxu0 0
      %1593 = vmatpush1.bf16.xpose.msra.mxu0 0
      %1594 = vmatprep.subr.bf16.mxu0 0
      %1595 = vmatpush1.bf16.xpose.msra.mxu0 0
      %1596 = vmatprep.subr.bf16.mxu0 0
      %1597 = vmatpush1.bf16.xpose.msra.mxu0 0
      %1598 = vmatprep.subr.bf16.mxu0 0
      %1599 = vmatpush1.bf16.xpose.msra.mxu0 0
      %1600 = vmatprep.mubr.bf16.mxu0 0
      %1601 = vmatmul.mubr.bf16.gmra.mrb[0].mxu0 %v1563
      %v1602 = vpop.f32.mrb[0].mxu0
      %v1603 = vadd.f32 %v821, %v1602
      %v1604 = vpop.f32.mrb[0].mxu0
      %v1605 = vpop.f32.mrb[0].mxu0
      %v1606 = vpop.f32.mrb[0].mxu0
      %1607 = vdwg.mxu0
      %v1608 = vsel %vm827, %v1553, -inf
      %1609 = vmax.xlane.f32.xlu0 %v1608
      %v1610 = vpop.xlane.xlu0 %1609
      %v1611 = vsel %vm827, %v1603, -inf
      %1612 = vmax.xlane.f32.xlu0 %v1611
      %v1613 = vpop.xlane.xlu0 %1612
      %v1614 = vsub.f32 %v1553, %v1610
      %v1615 = vsub.f32 %v1603, %v1613
      %v1616 = vmul.f32 %v1614, 1.442695
      %v1617 = vpow.pop %v1616
      %v1618 = vmul.f32 %v1615, 1.442695
      %v1619 = vpow.pop %v1618
      %v1620 = vsel %vm827, %v1617, 0.0
      %1621 = vadd.xlane.f32.xlu0 %v1620
      %v1622 = vpop.xlane.xlu0 %1621
      %v1623 = vsel %vm827, %v1619, 0.0
      %1624 = vadd.xlane.f32.xlu0 %v1623
      %v1625 = vpop.xlane.xlu0 %1624
      %v1626 = vrcp.pop %v1622
      %v1627 = vrcp.pop %v1625
      %v1628 = vmul.f32 %v1617, %v1626
      %v1629 = vmul.f32 %v1619, %v1627
      %v1630 = vpack.c.bf16 %v1628, %v1628
      %v1631 = vpack.c.bf16 %v1629, %v1629
      %1632 = vrot.lane.b32.xlu0 %v822, 40
      %v1633 = vpop.permute.xlu0 %1632
      %v1635 = vsel %vm827, %v1630, 0
      %v1638 = vsel %vm952, %v1633, 0
      %1640 = vmatprep.subr.bf16.mxu0 0
      %1641 = vmatpush1.bf16.msra.mxu0 %v1638
      %1642 = vmatprep.subr.bf16.mxu0 0
      %1643 = vmatpush1.bf16.msra.mxu0 0
      %1644 = vmatprep.subr.bf16.mxu0 0
      %1645 = vmatpush1.bf16.msra.mxu0 0
      %1646 = vmatprep.subr.bf16.mxu0 0
      %1647 = vmatpush1.bf16.msra.mxu0 0
      %1648 = vmatprep.subr.bf16.mxu0 0
      %1649 = vmatpush1.bf16.msra.mxu0 0
      %1650 = vmatprep.subr.bf16.mxu0 0
      %1651 = vmatpush1.bf16.msra.mxu0 0
      %1652 = vmatprep.subr.bf16.mxu0 0
      %1653 = vmatpush1.bf16.msra.mxu0 0
      %1654 = vmatprep.subr.bf16.mxu0 0
      %1655 = vmatpush1.bf16.msra.mxu0 0
      %1656 = vmatprep.subr.bf16.mxu0 0
      %1657 = vmatpush1.bf16.msra.mxu0 0
      %1658 = vmatprep.subr.bf16.mxu0 0
      %1659 = vmatpush1.bf16.msra.mxu0 0
      %1660 = vmatprep.subr.bf16.mxu0 0
      %1661 = vmatpush1.bf16.msra.mxu0 0
      %1662 = vmatprep.subr.bf16.mxu0 0
      %1663 = vmatpush1.bf16.msra.mxu0 0
      %1664 = vmatprep.subr.bf16.mxu0 0
      %1665 = vmatpush1.bf16.msra.mxu0 0
      %1666 = vmatprep.subr.bf16.mxu0 0
      %1667 = vmatpush1.bf16.msra.mxu0 0
      %1668 = vmatprep.subr.bf16.mxu0 0
      %1669 = vmatpush1.bf16.msra.mxu0 0
      %1670 = vmatprep.subr.bf16.mxu0 0
      %1671 = vmatpush1.bf16.msra.mxu0 0
      %1672 = vmatprep.mubr.bf16.mxu0 0
      %1673 = vmatmul.mubr.bf16.gmra.mrb[0].mxu0 %v1635
      %v1674 = vpop.f32.mrb[0].mxu0
      %v1675 = vadd.f32 0.0, %v1674
      %v1676 = vpop.f32.mrb[0].mxu0
      %v1677 = vpop.f32.mrb[0].mxu0
      %v1678 = vpop.f32.mrb[0].mxu0
      %1679 = vdwg.mxu0
      %1680 = vrot.lane.b32.xlu0 %v823, 40
      %v1681 = vpop.permute.xlu0 %1680
      %v1683 = vsel %vm827, %v1631, 0
      %v1686 = vsel %vm952, %v1681, 0
      %1688 = vmatprep.subr.bf16.mxu0 0
      %1689 = vmatpush1.bf16.msra.mxu0 %v1686
      %1690 = vmatprep.subr.bf16.mxu0 0
      %1691 = vmatpush1.bf16.msra.mxu0 0
      %1692 = vmatprep.subr.bf16.mxu0 0
      %1693 = vmatpush1.bf16.msra.mxu0 0
      %1694 = vmatprep.subr.bf16.mxu0 0
      %1695 = vmatpush1.bf16.msra.mxu0 0
      %1696 = vmatprep.subr.bf16.mxu0 0
      %1697 = vmatpush1.bf16.msra.mxu0 0
      %1698 = vmatprep.subr.bf16.mxu0 0
      %1699 = vmatpush1.bf16.msra.mxu0 0
      %1700 = vmatprep.subr.bf16.mxu0 0
      %1701 = vmatpush1.bf16.msra.mxu0 0
      %1702 = vmatprep.subr.bf16.mxu0 0
      %1703 = vmatpush1.bf16.msra.mxu0 0
      %1704 = vmatprep.subr.bf16.mxu0 0
      %1705 = vmatpush1.bf16.msra.mxu0 0
      %1706 = vmatprep.subr.bf16.mxu0 0
      %1707 = vmatpush1.bf16.msra.mxu0 0
      %1708 = vmatprep.subr.bf16.mxu0 0
      %1709 = vmatpush1.bf16.msra.mxu0 0
      %1710 = vmatprep.subr.bf16.mxu0 0
      %1711 = vmatpush1.bf16.msra.mxu0 0
      %1712 = vmatprep.subr.bf16.mxu0 0
      %1713 = vmatpush1.bf16.msra.mxu0 0
      %1714 = vmatprep.subr.bf16.mxu0 0
      %1715 = vmatpush1.bf16.msra.mxu0 0
      %1716 = vmatprep.subr.bf16.mxu0 0
      %1717 = vmatpush1.bf16.msra.mxu0 0
      %1718 = vmatprep.subr.bf16.mxu0 0
      %1719 = vmatpush1.bf16.msra.mxu0 0
      %1720 = vmatprep.mubr.bf16.mxu0 0
      %1721 = vmatmul.mubr.bf16.gmra.mrb[0].mxu0 %v1683
      %v1722 = vpop.f32.mrb[0].mxu0
      %v1723 = vadd.f32 0.0, %v1722
      %v1724 = vpop.f32.mrb[0].mxu0
      %v1725 = vpop.f32.mrb[0].mxu0
      %v1726 = vpop.f32.mrb[0].mxu0
      %1727 = vdwg.mxu0
      %1730 = vrot.lane.b32.xlu0 %v1675, 24
      %v1731 = vpop.permute.xlu0 %1730
      %1732 = vrot.lane.b32.xlu0 %v1723, 24
      %v1733 = vpop.permute.xlu0 %1732
      %vm1736 = vcmask 261312
      %1737 = vst.msk [vmem:[#allocation3] sm:$0xff] %vm1736, %v1731
      %1738 = vst.msk [vmem:[#allocation3 + $0x8] sm:$0xff] %vm1736, %v1733
      %v1739 = vld [vmem:[#allocation3] sm:$0xff]
      %v1740 = vld [vmem:[#allocation3 + $0x8] sm:$0xff]
      %v1741 = vpack.c.bf16 %v1740, %v1739
      %v1742 = vld [vmem:[%s661] sm:$0xf]
      %v1743 = vld [vmem:[%s661 + $0x4] sm:$0xf]
      %v1744 = vld [vmem:[%s661 + $0x8] sm:$0xf]
      %v1745 = vld [vmem:[%s661 + $0xc] sm:$0xf]
      %v1750 = vunpack.c.l.b16 %v1742
      %v1751 = vunpack.c.l.b16 %v1743
      %v1752 = vunpack.c.l.b16 %v1744
      %v1753 = vunpack.c.l.b16 %v1745
      %v1754 = vpack.c.b16 %v1751, %v1750
      %v1755 = vpack.c.b16 %v1753, %v1752
      %v1759 = vsel %vm706, %v1741, 0
      %1761 = vmatprep.subr.bf16.mxu0 0
      %1762 = vmatpush1.bf16.msra.mxu0 %v1754
      %1763 = vmatprep.subr.bf16.mxu0 0
      %1764 = vmatpush1.bf16.msra.mxu0 %v1755
      %1765 = vmatprep.subr.bf16.mxu0 0
      %1766 = vmatpush1.bf16.msra.mxu0 0
      %1767 = vmatprep.subr.bf16.mxu0 0
      %1768 = vmatpush1.bf16.msra.mxu0 0
      %1769 = vmatprep.subr.bf16.mxu0 0
      %1770 = vmatpush1.bf16.msra.mxu0 0
      %1771 = vmatprep.subr.bf16.mxu0 0
      %1772 = vmatpush1.bf16.msra.mxu0 0
      %1773 = vmatprep.subr.bf16.mxu0 0
      %1774 = vmatpush1.bf16.msra.mxu0 0
      %1775 = vmatprep.subr.bf16.mxu0 0
      %1776 = vmatpush1.bf16.msra.mxu0 0
      %1777 = vmatprep.subr.bf16.mxu0 0
      %1778 = vmatpush1.bf16.msra.mxu0 0
      %1779 = vmatprep.subr.bf16.mxu0 0
      %1780 = vmatpush1.bf16.msra.mxu0 0
      %1781 = vmatprep.subr.bf16.mxu0 0
      %1782 = vmatpush1.bf16.msra.mxu0 0
      %1783 = vmatprep.subr.bf16.mxu0 0
      %1784 = vmatpush1.bf16.msra.mxu0 0
      %1785 = vmatprep.subr.bf16.mxu0 0
      %1786 = vmatpush1.bf16.msra.mxu0 0
      %1787 = vmatprep.subr.bf16.mxu0 0
      %1788 = vmatpush1.bf16.msra.mxu0 0
      %1789 = vmatprep.subr.bf16.mxu0 0
      %1790 = vmatpush1.bf16.msra.mxu0 0
      %1791 = vmatprep.subr.bf16.mxu0 0
      %1792 = vmatpush1.bf16.msra.mxu0 0
      %1793 = vmatprep.mubr.bf16.mxu0 0
      %1794 = vmatmul.mubr.bf16.gmra.mrb[0].mxu0 %v1759
      %v1795 = vpop.f32.mrb[0].mxu0
      %v1796 = vadd.f32 0.0, %v1795
      %v1797 = vpop.f32.mrb[0].mxu0
      %v1798 = vpop.f32.mrb[0].mxu0
      %v1799 = vadd.f32 0.0, %v1798
      %v1800 = vpop.f32.mrb[0].mxu0
      %1801 = vdwg.mxu0
      %v1802 = vadd.f32 %v702, %v1796
      %v1803 = vadd.f32 %v703, %v1799
      %v1804 = vld [vmem:[%s664] sm:$0x1]
      %v1806 = vlaneseq
      %v1807 = vshrl.u32 %v1806, 7
      %v1808 = vsub.s32 0, %v1807
      %v1809 = vrot.slane %v1804, %v1808
      %v1811 = vadd.f32 %v1802, %v1809
      %v1812 = vadd.f32 %v1803, %v1809
      %v1813 = vld [vmem:[%s667] sm:$0x1]
      %v1814 = vld [vmem:[%s670] sm:$0x1]
      %v1815 = vsel %vm706, %v1811, 0.0
      %1816 = vadd.xlane.f32.xlu0 %v1815
      %v1817 = vpop.xlane.xlu0 %1816
      %v1818 = vsel %vm706, %v1812, 0.0
      %1819 = vadd.xlane.f32.xlu0 %v1818
      %v1820 = vpop.xlane.xlu0 %1819
      %v1821 = vmul.f32 %v1817, %v713
      %v1822 = vmul.f32 %v1820, %v713
      %v1823 = vsub.f32 %v1811, %v1821
      %v1824 = vsub.f32 %v1812, %v1822
      %v1825 = vmul.f32 %v1823, %v1823
      %v1826 = vmul.f32 %v1824, %v1824
      %v1827 = vsel %vm706, %v1825, 0.0
      %1828 = vadd.xlane.f32.xlu0 %v1827
      %v1829 = vpop.xlane.xlu0 %1828
      %v1830 = vsel %vm706, %v1826, 0.0
      %1831 = vadd.xlane.f32.xlu0 %v1830
      %v1832 = vpop.xlane.xlu0 %1831
      %v1833 = vmul.f32 %v1829, %v713
      %v1834 = vmul.f32 %v1832, %v713
      %v1835 = vadd.f32 %v1833, 1e-12
      %v1836 = vadd.f32 %v1834, 1e-12
      %v1837 = vrsqrt.pop %v1835
      %v1838 = vrsqrt.pop %v1836
      %v1839 = vmul.f32 %v1823, %v1837
      %v1840 = vmul.f32 %v1824, %v1838
      %v1842 = vlaneseq
      %v1843 = vshrl.u32 %v1842, 7
      %v1844 = vsub.s32 0, %v1843
      %v1845 = vrot.slane %v1813, %v1844
      %v1847 = vmul.f32 %v1839, %v1845
      %v1848 = vmul.f32 %v1840, %v1845
      %v1850 = vlaneseq
      %v1851 = vshrl.u32 %v1850, 7
      %v1852 = vsub.s32 0, %v1851
      %v1853 = vrot.slane %v1814, %v1852
      %v1855 = vadd.f32 %v1847, %v1853
      %v1856 = vadd.f32 %v1848, %v1853
      %v1857 = vpack.c.bf16 %v1856, %v1855
      %v1858 = vld [vmem:[%s675] sm:$0xf]
      %v1859 = vld [vmem:[%s675 + $0x4] sm:$0xf]
      %v1860 = vld [vmem:[%s675 + $0x8] sm:$0xf]
      %v1861 = vld [vmem:[%s675 + $0xc] sm:$0xf]
      %v1862 = vld [vmem:[%s678] sm:$0x1]
      %v1864 = vlaneseq
      %v1865 = vshrl.u32 %v1864, 7
      %v1866 = vsub.s32 0, %v1865
      %v1867 = vrot.slane %v1862, %v1866
      %v1873 = vunpack.c.l.b16 %v1858
      %v1874 = vunpack.c.l.b16 %v1859
      %v1875 = vunpack.c.l.b16 %v1860
      %v1876 = vunpack.c.l.b16 %v1861
      %v1877 = vpack.c.b16 %v1874, %v1873
      %v1878 = vpack.c.b16 %v1876, %v1875
      %v1882 = vsel %vm706, %v1857, 0
      %1884 = vmatprep.subr.bf16.mxu0 0
      %1885 = vmatpush1.bf16.msra.mxu0 %v1877
      %1886 = vmatprep.subr.bf16.mxu0 0
      %1887 = vmatpush1.bf16.msra.mxu0 %v1878
      %1888 = vmatprep.subr.bf16.mxu0 0
      %1889 = vmatpush1.bf16.msra.mxu0 0
      %1890 = vmatprep.subr.bf16.mxu0 0
      %1891 = vmatpush1.bf16.msra.mxu0 0
      %1892 = vmatprep.subr.bf16.mxu0 0
      %1893 = vmatpush1.bf16.msra.mxu0 0
      %1894 = vmatprep.subr.bf16.mxu0 0
      %1895 = vmatpush1.bf16.msra.mxu0 0
      %1896 = vmatprep.subr.bf16.mxu0 0
      %1897 = vmatpush1.bf16.msra.mxu0 0
      %1898 = vmatprep.subr.bf16.mxu0 0
      %1899 = vmatpush1.bf16.msra.mxu0 0
      %1900 = vmatprep.subr.bf16.mxu0 0
      %1901 = vmatpush1.bf16.msra.mxu0 0
      %1902 = vmatprep.subr.bf16.mxu0 0
      %1903 = vmatpush1.bf16.msra.mxu0 0
      %1904 = vmatprep.subr.bf16.mxu0 0
      %1905 = vmatpush1.bf16.msra.mxu0 0
      %1906 = vmatprep.subr.bf16.mxu0 0
      %1907 = vmatpush1.bf16.msra.mxu0 0
      %1908 = vmatprep.subr.bf16.mxu0 0
      %1909 = vmatpush1.bf16.msra.mxu0 0
      %1910 = vmatprep.subr.bf16.mxu0 0
      %1911 = vmatpush1.bf16.msra.mxu0 0
      %1912 = vmatprep.subr.bf16.mxu0 0
      %1913 = vmatpush1.bf16.msra.mxu0 0
      %1914 = vmatprep.subr.bf16.mxu0 0
      %1915 = vmatpush1.bf16.msra.mxu0 0
      %1916 = vmatprep.mubr.bf16.mxu0 0
      %1917 = vmatmul.mubr.bf16.gmra.mrb[0].mxu0 %v1882
      %v1918 = vpop.f32.mrb[0].mxu0
      %v1919 = vadd.f32 %v1867, %v1918
      %v1920 = vpop.f32.mrb[0].mxu0
      %v1921 = vpop.f32.mrb[0].mxu0
      %v1922 = vadd.f32 %v1867, %v1921
      %v1923 = vpop.f32.mrb[0].mxu0
      %1924 = vdwg.mxu0
      %v1925 = vmul.f32 %v1919, 0.5
      %v1926 = vmul.f32 %v1922, 0.5
      %v1927 = vmul.f32 %v1919, 0.70710677
      %v1928 = vmul.f32 %v1922, 0.70710677
      %v1929 = verf.f32.pop %v1927
      %v1930 = verf.f32.pop %v1928
      %v1931 = vadd.f32 %v1929, 1.0
      %v1932 = vadd.f32 %v1930, 1.0
      %v1933 = vmul.f32 %v1925, %v1931
      %v1934 = vmul.f32 %v1926, %v1932
      %v1935 = vpack.c.bf16 %v1934, %v1933
      %v1936 = vld [vmem:[%s683] sm:$0xf]
      %v1937 = vld [vmem:[%s683 + $0x4] sm:$0xf]
      %v1938 = vld [vmem:[%s683 + $0x8] sm:$0xf]
      %v1939 = vld [vmem:[%s683 + $0xc] sm:$0xf]
      %v1940 = vld [vmem:[%s683 + $0x10] sm:$0xf]
      %v1941 = vld [vmem:[%s683 + $0x14] sm:$0xf]
      %v1942 = vld [vmem:[%s683 + $0x18] sm:$0xf]
      %v1943 = vld [vmem:[%s683 + $0x1c] sm:$0xf]
      %v1944 = vld [vmem:[%s683 + $0x20] sm:$0xf]
      %v1945 = vld [vmem:[%s683 + $0x24] sm:$0xf]
      %v1946 = vld [vmem:[%s683 + $0x28] sm:$0xf]
      %v1947 = vld [vmem:[%s683 + $0x2c] sm:$0xf]
      %v1948 = vld [vmem:[%s683 + $0x30] sm:$0xf]
      %v1949 = vld [vmem:[%s683 + $0x34] sm:$0xf]
      %v1950 = vld [vmem:[%s683 + $0x38] sm:$0xf]
      %v1951 = vld [vmem:[%s683 + $0x3c] sm:$0xf]
      %v1968 = vunpack.c.l.b16 %v1936
      %v1969 = vunpack.c.l.b16 %v1937
      %v1970 = vunpack.c.l.b16 %v1938
      %v1971 = vunpack.c.l.b16 %v1939
      %v1972 = vunpack.c.l.b16 %v1940
      %v1973 = vunpack.c.l.b16 %v1941
      %v1974 = vunpack.c.l.b16 %v1942
      %v1975 = vunpack.c.l.b16 %v1943
      %v1976 = vunpack.c.l.b16 %v1944
      %v1977 = vunpack.c.l.b16 %v1945
      %v1978 = vunpack.c.l.b16 %v1946
      %v1979 = vunpack.c.l.b16 %v1947
      %v1980 = vunpack.c.l.b16 %v1948
      %v1981 = vunpack.c.l.b16 %v1949
      %v1982 = vunpack.c.l.b16 %v1950
      %v1983 = vunpack.c.l.b16 %v1951
      %v1984 = vpack.c.b16 %v1969, %v1968
      %v1985 = vpack.c.b16 %v1971, %v1970
      %v1986 = vpack.c.b16 %v1973, %v1972
      %v1987 = vpack.c.b16 %v1975, %v1974
      %v1988 = vpack.c.b16 %v1977, %v1976
      %v1989 = vpack.c.b16 %v1979, %v1978
      %v1990 = vpack.c.b16 %v1981, %v1980
      %v1991 = vpack.c.b16 %v1983, %v1982
      %2000 = vmatprep.subr.bf16.mxu0 0
      %2001 = vmatpush1.bf16.msra.mxu0 %v1984
      %2002 = vmatprep.subr.bf16.mxu0 0
      %2003 = vmatpush1.bf16.msra.mxu0 %v1985
      %2004 = vmatprep.subr.bf16.mxu0 0
      %2005 = vmatpush1.bf16.msra.mxu0 %v1986
      %2006 = vmatprep.subr.bf16.mxu0 0
      %2007 = vmatpush1.bf16.msra.mxu0 %v1987
      %2008 = vmatprep.subr.bf16.mxu0 0
      %2009 = vmatpush1.bf16.msra.mxu0 %v1988
      %2010 = vmatprep.subr.bf16.mxu0 0
      %2011 = vmatpush1.bf16.msra.mxu0 %v1989
      %2012 = vmatprep.subr.bf16.mxu0 0
      %2013 = vmatpush1.bf16.msra.mxu0 %v1990
      %2014 = vmatprep.subr.bf16.mxu0 0
      %2015 = vmatpush1.bf16.msra.mxu0 %v1991
      %2016 = vmatprep.subr.bf16.mxu0 0
      %2017 = vmatpush1.bf16.msra.mxu0 0
      %2018 = vmatprep.subr.bf16.mxu0 0
      %2019 = vmatpush1.bf16.msra.mxu0 0
      %2020 = vmatprep.subr.bf16.mxu0 0
      %2021 = vmatpush1.bf16.msra.mxu0 0
      %2022 = vmatprep.subr.bf16.mxu0 0
      %2023 = vmatpush1.bf16.msra.mxu0 0
      %2024 = vmatprep.subr.bf16.mxu0 0
      %2025 = vmatpush1.bf16.msra.mxu0 0
      %2026 = vmatprep.subr.bf16.mxu0 0
      %2027 = vmatpush1.bf16.msra.mxu0 0
      %2028 = vmatprep.subr.bf16.mxu0 0
      %2029 = vmatpush1.bf16.msra.mxu0 0
      %2030 = vmatprep.subr.bf16.mxu0 0
      %2031 = vmatpush1.bf16.msra.mxu0 0
      %2032 = vmatprep.mubr.bf16.mxu0 0
      %2033 = vmatmul.mubr.bf16.gmra.mrb[0].mxu0 %v1935
      %v2034 = vpop.f32.mrb[0].mxu0
      %v2035 = vadd.f32 0.0, %v2034
      %v2036 = vpop.f32.mrb[0].mxu0
      %v2037 = vpop.f32.mrb[0].mxu0
      %v2038 = vadd.f32 0.0, %v2037
      %v2039 = vpop.f32.mrb[0].mxu0
      %2040 = vdwg.mxu0
      %v2041 = vadd.f32 %v1811, %v2035
      %v2042 = vadd.f32 %v1812, %v2038
      %v2043 = vld [vmem:[%s686] sm:$0x1]
      %v2045 = vlaneseq
      %v2046 = vshrl.u32 %v2045, 7
      %v2047 = vsub.s32 0, %v2046
      %v2048 = vrot.slane %v2043, %v2047
      %v2050 = vadd.f32 %v2041, %v2048
      %v2051 = vadd.f32 %v2042, %v2048
      %2052 = vst.msk [vmem:[#allocation2] sm:$0xff] %vm706, %v2050
      %2053 = vst.msk [vmem:[#allocation2 + $0x8] sm:$0xff] %vm706, %v2051
      %2054 = vst.msk [vmem:[%s691] sm:$0xff] %vm706, %v2050
      %2055 = vst.msk [vmem:[%s691 + $0x8] sm:$0xff] %vm706, %v2051
      %p2056 = scmp.eq.s32.totalorder %s28, 1
      // Predicated region
      $region85: #{vit1_forward.3} parent=79 // pred_check
        %p2057 = pneg %p2056
      $region86: #{vit1_forward.3} parent=79 // pred_check_branch
        %2059 = sbr.rel (%p2057) target = $region88
      $region87: #{vit1_forward.3} parent=79 // pred_region
        %v2060 = vld [vmem:[%s13] sm:$0x1]
        %v2061 = vld [vmem:[%s14] sm:$0x1]
        %v2062 = vsel %vm706, %v2050, 0.0
        %2063 = vadd.xlane.f32.xlu0 %v2062
        %v2064 = vpop.xlane.xlu0 %2063
        %v2065 = vsel %vm706, %v2051, 0.0
        %2066 = vadd.xlane.f32.xlu0 %v2065
        %v2067 = vpop.xlane.xlu0 %2066
        %v2068 = vmul.f32 %v2064, %v713
        %v2069 = vmul.f32 %v2067, %v713
        %v2070 = vsub.f32 %v2050, %v2068
        %v2071 = vsub.f32 %v2051, %v2069
        %v2072 = vmul.f32 %v2070, %v2070
        %v2073 = vmul.f32 %v2071, %v2071
        %v2074 = vsel %vm706, %v2072, 0.0
        %2075 = vadd.xlane.f32.xlu0 %v2074
        %v2076 = vpop.xlane.xlu0 %2075
        %v2077 = vsel %vm706, %v2073, 0.0
        %2078 = vadd.xlane.f32.xlu0 %v2077
        %v2079 = vpop.xlane.xlu0 %2078
        %v2080 = vmul.f32 %v2076, %v713
        %v2081 = vmul.f32 %v2079, %v713
        %v2082 = vadd.f32 %v2080, 1e-12
        %v2083 = vadd.f32 %v2081, 1e-12
        %v2084 = vrsqrt.pop %v2082
        %v2085 = vrsqrt.pop %v2083
        %v2086 = vmul.f32 %v2070, %v2084
        %v2087 = vmul.f32 %v2071, %v2085
        %v2089 = vlaneseq
        %v2090 = vshrl.u32 %v2089, 7
        %v2091 = vsub.s32 0, %v2090
        %v2092 = vrot.slane %v2060, %v2091
        %v2094 = vmul.f32 %v2086, %v2092
        %v2095 = vmul.f32 %v2087, %v2092
        %v2097 = vlaneseq
        %v2098 = vshrl.u32 %v2097, 7
        %v2099 = vsub.s32 0, %v2098
        %v2100 = vrot.slane %v2061, %v2099
        %v2102 = vadd.f32 %v2094, %v2100
        %v2103 = vadd.f32 %v2095, %v2100
        %2104 = vst.msk [vmem:[%s16] sm:$0xff] %vm706, %v2102
        %2105 = vst.msk [vmem:[%s16 + $0x8] sm:$0xff] %vm706, %v2103
      $region88: #{vit1_forward.3} parent=79 // pred_fallthru
        _
      %p2106 = scmp.lt.s32.totalorder %s28, 1
      %s2107 = scalar_select %p2106, %s28, 1
      %s2108 = smul.addr %s2107, 2
      %s2109 = smul.addr %s2108, 8
      %s2110 = scalar_lea.vmem %s15, %s2109
      // Predicated region
      $region89: #{vit1_forward.3} parent=79 // pred_check
        %p2111 = pneg %p421
      $region90: #{vit1_forward.3} parent=79 // pred_check_branch
        %2113 = sbr.rel (%p2111) target = $region92
      $region91: #{vit1_forward.3} parent=79 // pred_region
        _
      $region92: #{vit1_forward.3} parent=79 // pred_fallthru
        _
      // Predicated region
      $region93: #{vit1_forward.3} parent=79 // pred_check
        %p2114 = pneg %p442
      $region94: #{vit1_forward.3} parent=79 // pred_check_branch
        %2116 = sbr.rel (%p2114) target = $region96
      $region95: #{vit1_forward.3} parent=79 // pred_region
        _
      $region96: #{vit1_forward.3} parent=79 // pred_fallthru
        _
      // Predicated region
      $region97: #{vit1_forward.3} parent=79 // pred_check
        %p2117 = pneg %p442
      $region98: #{vit1_forward.3} parent=79 // pred_check_branch
        %2119 = sbr.rel (%p2117) target = $region100
      $region99: #{vit1_forward.3} parent=79 // pred_region
        _
      $region100: #{vit1_forward.3} parent=79 // pred_fallthru
        _
    $region80: #{vit1_forward.3} parent=5 // pred_fallthru
      _
    %p2120 = scmp.le.s32.totalorder 2, %s23
    // Predicated region
    $region101: #{vit1_forward.3} parent=5 // pred_check
      %p2121 = pneg %p2120
    $region102: #{vit1_forward.3} parent=5 // pred_check_branch
      %2123 = sbr.rel (%p2121) target = $region104
    $region103: #{vit1_forward.3} parent=5 // pred_region
      %s2124 = ssub.s32 %s23, 2
      // Predicated region
      $region105: #{vit1_forward.3} parent=103 // pred_check
        %p2125 = pneg %p427
      $region106: #{vit1_forward.3} parent=103 // pred_check_branch
        %2127 = sbr.rel (%p2125) target = $region108
      $region107: #{vit1_forward.3} parent=103 // pred_region
        %p2128 = scmp.lt.s32.totalorder %s29, 1
        %s2129 = scalar_select %p2128, %s29, 1
        %s2130 = smul.addr %s2129, 2
        %s2131 = smul.addr %s2130, 8
        %s2132 = scalar_lea.vmem %s15, %s2131
      $region108: #{vit1_forward.3} parent=103 // pred_fallthru
        _
    $region104: #{vit1_forward.3} parent=5 // pred_fallthru
      _
  $region6: #{vit1_forward.3} parent=0 // loop_footer
    %s27 = sadd.s32 1, %s23
  $region7: #{vit1_forward.3} parent=0 // loop_footer_branch
    %22 = sbr.rel target = $region3
  $region8: #{vit1_forward.3} parent=0 // loop_exit
    _

</llo_original>
